<compile_context>
chip_gen: v7x
topology: tpu7x:2x2x1
jax: 0.10.0
libtpu: 0.0.40
codegen_flags: <defaults>
</compile_context>

<pallas_src>
import jax
import jax.numpy as jnp
from jax.experimental import pallas as pl
from jax.experimental.pallas import tpu as pltpu

EPS = 1e-5


def mlp_head_kernel(x_ref, w1_ref, gamma_ref, beta_ref, w2_ref, o_ref):
    k = pl.program_id(1)

    # Linear 1 tile (MXU, bf16 in / f32 accumulate).  No bias add: training-mode
    # BN's batch-mean subtraction cancels it exactly.
    h = jnp.dot(x_ref[...], w1_ref[...], preferred_element_type=jnp.float32)

    # BatchNorm1d, training mode (per-feature batch stats, biased variance),
    # computed in a single pass over h:
    #   var = E[h^2] - mean^2 ;  y = h*scale + (beta - mean*scale)
    inv_b = 1.0 / x_ref.shape[0]
    mean = jnp.sum(h, axis=0, keepdims=True) * inv_b            # (1, tH) f32
    ex2 = jnp.sum(h * h, axis=0, keepdims=True) * inv_b         # (1, tH) f32
    var = ex2 - mean * mean
    scale = gamma_ref[...] * jax.lax.rsqrt(var + EPS)           # gamma fused in
    shift = beta_ref[...] - mean * scale
    h = jnp.maximum(h * scale + shift, 0.0)                     # fused FMA+ReLU

    # Linear 2: partial product over this H tile (MXU, bf16 in / f32 out),
    # accumulated directly into the resident f32 output block (no scratch,
    # no zero-fill pass).
    partial = jnp.dot(h.astype(w2_ref.dtype), w2_ref[...],
                      preferred_element_type=jnp.float32)

    @pl.when(k == 0)
    def _():
        o_ref[0] = partial

    @pl.when(k > 0)
    def _():
        o_ref[0] += partial


def _vmem_bytes(B, D, O, block_h, mxu_itemsize):
    # Worst-case (double-buffered x/out) so a pipeline_mode fallback still fits.
    return (2 * B * D * mxu_itemsize            # x
            + 2 * D * block_h * mxu_itemsize    # w1 tile (double buffered)
            + 2 * block_h * O * mxu_itemsize    # w2 tile (double buffered)
            + 4 * block_h * 4                   # gamma + beta tiles
            + 2 * B * O * 4                     # resident f32 output block
            + 3 * B * block_h * 4)              # h / h*h / bf16-copy temporaries


def _pick_block_h(H, B, D, O, mxu_itemsize, vmem_budget):
    candidates = (1024, 512, 256, 128)
    divisors = [t for t in candidates if H % t == 0]
    if not divisors:
        raise ValueError(
            f"hidden_dim={H} is not divisible by any of {candidates}; pad the "
            "hidden dimension instead of making w1/w2 fully VMEM-resident.")
    for t in divisors:  # prefer large tiles (fewer steps, >=1KiB w1 DMA rows)
        if _vmem_bytes(B, D, O, t, mxu_itemsize) <= vmem_budget:
            return t
    return divisors[-1]


def _vmem_capacity_bytes():
    try:
        return int(pltpu.get_tpu_info().vmem_capacity_bytes)
    except Exception:
        return 64 * 1024 * 1024  # conservative (v7x per-core VMEM)


def _build_pallas_call(B, D, H, O, block_h, num_core_splits,
                       vmem_limit_bytes, single_buffer_invariants):
    n_h = H // block_h
    kps = n_h // num_core_splits  # k-steps per core split

    def invariant_spec(shape, index_map):
        # Grid-(k-)invariant blocks don't need double buffering.
        if single_buffer_invariants:
            return pl.BlockSpec(shape, index_map, pipeline_mode=pl.Buffered(1))
        return pl.BlockSpec(shape, index_map)

    grid_spec = pltpu.PrefetchScalarGridSpec(
        num_scalar_prefetch=0,
        grid=(num_core_splits, kps),
        in_specs=[
            invariant_spec((B, D), lambda c, k: (0, 0)),                # x
            pl.BlockSpec((D, block_h), lambda c, k: (0, c * kps + k)),  # w1 tile
            pl.BlockSpec((1, block_h), lambda c, k: (0, c * kps + k)),  # gamma
            pl.BlockSpec((1, block_h), lambda c, k: (0, c * kps + k)),  # beta
            pl.BlockSpec((block_h, O), lambda c, k: (c * kps + k, 0)),  # w2 tile
        ],
        out_specs=invariant_spec((1, B, O), lambda c, k: (c, 0, 0)),    # partials
    )

    return pl.pallas_call(
        mlp_head_kernel,
        out_shape=jax.ShapeDtypeStruct((num_core_splits, B, O), jnp.float32),
        grid_spec=grid_spec,
        compiler_params=pltpu.CompilerParams(
            dimension_semantics=("parallel", "arbitrary"),  # splits | H-reduction
            vmem_limit_bytes=vmem_limit_bytes,
        ),
    )


def mlp_head_forward(x, w1, b1, gamma, beta, w2, b2, *, block_h=None,
                     num_core_splits=1, mxu_dtype=jnp.bfloat16):
    """Forward pass of MLPHead: Linear -> BatchNorm1d(train) -> ReLU -> Linear.

    b1 is accepted for parity with the PyTorch module but unused: training-mode
    BatchNorm subtracts the per-feature batch mean, which cancels an additive
    bias on the first Linear exactly (NOT valid for eval-mode BN).
    Set num_core_splits=2 on v7x to spread the H reduction over both
    TensorCores; the per-split partials are summed in the wrapper.
    """
    del b1
    B, D = x.shape
    H = w1.shape[1]
    O = w2.shape[1]
    out_dtype = x.dtype

    mxu_itemsize = jnp.dtype(mxu_dtype).itemsize
    vmem_capacity = _vmem_capacity_bytes()
    if block_h is None:
        block_h = _pick_block_h(H, B, D, O, mxu_itemsize,
                                vmem_budget=(3 * vmem_capacity) // 4)
    if H % block_h != 0:
        raise ValueError(f"hidden_dim={H} must be divisible by block_h={block_h}")
    n_h = H // block_h
    if n_h % num_core_splits != 0:
        raise ValueError("number of H tiles must be divisible by num_core_splits")

    vmem_limit = min(int(vmem_capacity * 0.9),
                     max(32 * 1024 * 1024,
                         (_vmem_bytes(B, D, O, block_h, mxu_itemsize) * 5) // 4))

    # Feed the MXU bf16 (accumulation stays f32 inside the kernel); BN affine
    # params stay f32 for the f32 epilogue.
    x_m = x.astype(mxu_dtype)
    w1_m = w1.astype(mxu_dtype)
    w2_m = w2.astype(mxu_dtype)
    gamma_f = gamma.reshape(1, H).astype(jnp.float32)
    beta_f = beta.reshape(1, H).astype(jnp.float32)
    # NOTE(perf): at production sizes with block_h < 512, pre-tile w1 once to
    # [H/block_h, D, block_h] so each w1 tile DMA is one contiguous slab.

    def call(single_buffer):
        return _build_pallas_call(B, D, H, O, block_h, num_core_splits,
                                  vmem_limit, single_buffer)(
                                      x_m, w1_m, gamma_f, beta_f, w2_m)

    try:
        partials = jax.block_until_ready(call(True))
    except Exception:
        # pipeline_mode=pl.Buffered(1) unsupported on this jax/Mosaic build;
        # fall back to default double buffering (correct, slightly more VMEM).
        partials = call(False)

    # Combine core-split partials (one per TensorCore on v7x), add the second
    # Linear's bias, cast to caller dtype.  One cheap (B, O) elementwise op.
    out = jnp.sum(partials, axis=0) + b2.reshape(1, O).astype(jnp.float32)
    return out.astype(out_dtype)


def reference_forward(x, w1, b1, gamma, beta, w2, b2, mxu_dtype=jnp.float32):
    """Pure-JAX reference (training-mode BN), including b1.  `mxu_dtype` lets us
    build a reference with the same bf16 matmul boundaries as the kernel."""
    h = jnp.dot(x.astype(mxu_dtype), w1.astype(mxu_dtype),
                preferred_element_type=jnp.float32) + b1
    mean = jnp.mean(h, axis=0, keepdims=True)
    var = jnp.mean((h - mean) ** 2, axis=0, keepdims=True)
    h = (h - mean) * jax.lax.rsqrt(var + EPS) * gamma + beta
    h = jnp.maximum(h, 0.0)
    return jnp.dot(h.astype(mxu_dtype), w2.astype(mxu_dtype),
                   preferred_element_type=jnp.float32) + b2


if __name__ == "__main__":
    # Small shapes consistent with MLPHead(input_dim=64, hidden=512, output=256).
    # block_h=128 -> 4 H tiles (exercises the accumulation path);
    # num_core_splits=2 also exercises the dual-TensorCore (v7x) partial path.
    B, D, H, O = 8, 64, 512, 256
    BLOCK_H = 128

    key = jax.random.PRNGKey(0)
    kx, kw1, kb1, kg, kbt, kw2, kb2 = jax.random.split(key, 7)

    x = jax.random.normal(kx, (B, D), dtype=jnp.float32)

    lim1 = 1.0 / (D ** 0.5)
    w1 = jax.random.uniform(kw1, (D, H), jnp.float32, -lim1, lim1)
    b1 = jax.random.uniform(kb1, (1, H), jnp.float32, -lim1, lim1)
    gamma = 1.0 + 0.1 * jax.random.normal(kg, (1, H), dtype=jnp.float32)
    beta = 0.1 * jax.random.normal(kbt, (1, H), dtype=jnp.float32)
    lim2 = 1.0 / (H ** 0.5)
    w2 = jax.random.uniform(kw2, (H, O), jnp.float32, -lim2, lim2)
    b2 = jax.random.uniform(kb2, (1, O), jnp.float32, -lim2, lim2)

    out = mlp_head_forward(x, w1, b1, gamma, beta, w2, b2, block_h=BLOCK_H)
    out = jax.block_until_ready(out)

    out2 = mlp_head_forward(x, w1, b1, gamma, beta, w2, b2, block_h=BLOCK_H,
                            num_core_splits=2)
    out2 = jax.block_until_ready(out2)

    ref_bf16 = reference_forward(x, w1, b1, gamma, beta, w2, b2,
                                 mxu_dtype=jnp.bfloat16)
    ref_f32 = reference_forward(x, w1, b1, gamma, beta, w2, b2)

    assert out.shape == (B, O) and out2.shape == (B, O)
    # Tight check against a reference with the same bf16 MXU boundaries.
    assert jnp.allclose(out, ref_bf16, atol=2e-3, rtol=2e-3), "mismatch vs bf16 ref"
    assert jnp.allclose(out2, ref_bf16, atol=2e-3, rtol=2e-3), "split-path mismatch"
    # Loose sanity check against the full-f32 reference.
    assert jnp.allclose(out, ref_f32, atol=5e-2, rtol=5e-2), "mismatch vs f32 ref"

    print("KERNEL_OK")
</pallas_src>

<mosaic_0001>
module attributes {stable_mosaic.version = 11 : i64} {
  func.func @mlp_head_kernel(%arg0: i32, %arg1: i32, %arg2: memref<8x64xbf16, #tpu.memory_space<vmem>>, %arg3: memref<64x128xbf16, #tpu.memory_space<vmem>>, %arg4: memref<1x128xf32, #tpu.memory_space<vmem>>, %arg5: memref<1x128xf32, #tpu.memory_space<vmem>>, %arg6: memref<128x256xbf16, #tpu.memory_space<vmem>>, %arg7: memref<1x8x256xf32, #tpu.memory_space<vmem>>) attributes {dimension_semantics = [#tpu.dimension_semantics<parallel>, #tpu.dimension_semantics<arbitrary>], iteration_bounds = array<i64: 1, 4>, scalar_prefetch = 0 : i64, scratch_operands = 0 : i64, tpu.core_type = #tpu.core_type<tc>, window_params = [{pipeline_mode = #tpu.pipeline_mode<synchronous>, transform_indices = @transform_0, window_bounds = array<i64: 8, 64>}, {transform_indices = @transform_1, window_bounds = array<i64: 64, 128>}, {transform_indices = @transform_2, window_bounds = array<i64: 1, 128>}, {transform_indices = @transform_3, window_bounds = array<i64: 1, 128>}, {transform_indices = @transform_4, window_bounds = array<i64: 128, 256>}, {pipeline_mode = #tpu.pipeline_mode<synchronous>, transform_indices = @transform_5, window_bounds = array<i64: 1, 8, 256>}]} {
    %c0 = arith.constant 0 : index
    %c0_0 = arith.constant 0 : index
    %0 = vector.load %arg2[%c0, %c0_0] : memref<8x64xbf16, #tpu.memory_space<vmem>>, vector<8x64xbf16>
    %c0_1 = arith.constant 0 : index
    %c0_2 = arith.constant 0 : index
    %1 = vector.load %arg3[%c0_1, %c0_2] : memref<64x128xbf16, #tpu.memory_space<vmem>>, vector<64x128xbf16>
    %cst = arith.constant dense<0.000000e+00> : vector<8x128xf32>
    %2 = tpu.matmul %0, %1, %cst {dimension_numbers = #tpu.dot_dimension_numbers<[1], [0], [0], [1], [0, 0, 1, 1], [], []>} : vector<8x64xbf16>, vector<64x128xbf16>, vector<8x128xf32> -> vector<8x128xf32>
    %cst_3 = arith.constant dense<0.000000e+00> : vector<128xf32>
    %3 = vector.multi_reduction <add>, %2, %cst_3 [0] : vector<8x128xf32> to vector<128xf32>
    %4 = vector.shape_cast %3 : vector<128xf32> to vector<1x128xf32>
    %cst_4 = arith.constant 1.250000e-01 : f32
    %5 = vector.broadcast %cst_4 : f32 to vector<1x128xf32>
    %6 = arith.mulf %4, %5 : vector<1x128xf32>
    %7 = arith.mulf %2, %2 : vector<8x128xf32>
    %cst_5 = arith.constant dense<0.000000e+00> : vector<128xf32>
    %8 = vector.multi_reduction <add>, %7, %cst_5 [0] : vector<8x128xf32> to vector<128xf32>
    %9 = vector.shape_cast %8 : vector<128xf32> to vector<1x128xf32>
    %cst_6 = arith.constant 1.250000e-01 : f32
    %10 = vector.broadcast %cst_6 : f32 to vector<1x128xf32>
    %11 = arith.mulf %9, %10 : vector<1x128xf32>
    %12 = arith.mulf %6, %6 : vector<1x128xf32>
    %13 = arith.subf %11, %12 : vector<1x128xf32>
    %c0_7 = arith.constant 0 : index
    %c0_8 = arith.constant 0 : index
    %14 = vector.load %arg4[%c0_7, %c0_8] : memref<1x128xf32, #tpu.memory_space<vmem>>, vector<1x128xf32>
    %cst_9 = arith.constant 9.99999974E-6 : f32
    %15 = vector.broadcast %cst_9 : f32 to vector<1x128xf32>
    %16 = arith.addf %13, %15 : vector<1x128xf32>
    %17 = math.rsqrt %16 : vector<1x128xf32>
    %18 = arith.mulf %14, %17 : vector<1x128xf32>
    %c0_10 = arith.constant 0 : index
    %c0_11 = arith.constant 0 : index
    %19 = vector.load %arg5[%c0_10, %c0_11] : memref<1x128xf32, #tpu.memory_space<vmem>>, vector<1x128xf32>
    %20 = arith.mulf %6, %18 : vector<1x128xf32>
    %21 = arith.subf %19, %20 : vector<1x128xf32>
    %22 = vector.broadcast %18 : vector<1x128xf32> to vector<8x128xf32>
    %23 = arith.mulf %2, %22 : vector<8x128xf32>
    %24 = vector.broadcast %21 : vector<1x128xf32> to vector<8x128xf32>
    %25 = arith.addf %23, %24 : vector<8x128xf32>
    %cst_12 = arith.constant 0.000000e+00 : f32
    %26 = vector.broadcast %cst_12 : f32 to vector<8x128xf32>
    %27 = arith.maximumf %25, %26 : vector<8x128xf32>
    %28 = arith.truncf %27 : vector<8x128xf32> to vector<8x128xbf16>
    %c0_13 = arith.constant 0 : index
    %c0_14 = arith.constant 0 : index
    %29 = vector.load %arg6[%c0_13, %c0_14] : memref<128x256xbf16, #tpu.memory_space<vmem>>, vector<128x256xbf16>
    %cst_15 = arith.constant dense<0.000000e+00> : vector<8x256xf32>
    %30 = tpu.matmul %28, %29, %cst_15 {dimension_numbers = #tpu.dot_dimension_numbers<[1], [0], [0], [1], [0, 0, 1, 1], [], []>} : vector<8x128xbf16>, vector<128x256xbf16>, vector<8x256xf32> -> vector<8x256xf32>
    %c0_i32 = arith.constant 0 : i32
    %31 = arith.cmpi eq, %arg1, %c0_i32 : i32
    %32 = arith.extui %31 : i1 to i32
    %c0_i32_16 = arith.constant 0 : i32
    %33 = arith.cmpi ne, %32, %c0_i32_16 : i32
    scf.if %33 {
      %c0_19 = arith.constant 0 : index
      %c0_20 = arith.constant 0 : index
      %c0_21 = arith.constant 0 : index
      %37 = vector.load %arg7[%c0_19, %c0_20, %c0_21] : memref<1x8x256xf32, #tpu.memory_space<vmem>>, vector<1x8x256xf32>
      %38 = vector.shape_cast %37 : vector<1x8x256xf32> to vector<8x256xf32>
      %39 = vector.shape_cast %30 : vector<8x256xf32> to vector<1x8x256xf32>
      tpu.vector_store %arg7[%c0_19, %c0_20, %c0_21], %39 {strides = array<i32>} : memref<1x8x256xf32, #tpu.memory_space<vmem>>, vector<1x8x256xf32>,
    } else {
    }
    %c0_i32_17 = arith.constant 0 : i32
    %34 = arith.cmpi sgt, %arg1, %c0_i32_17 : i32
    %35 = arith.extui %34 : i1 to i32
    %c0_i32_18 = arith.constant 0 : i32
    %36 = arith.cmpi ne, %35, %c0_i32_18 : i32
    scf.if %36 {
      %c0_19 = arith.constant 0 : index
      %c0_20 = arith.constant 0 : index
      %c0_21 = arith.constant 0 : index
      %37 = vector.load %arg7[%c0_19, %c0_20, %c0_21] : memref<1x8x256xf32, #tpu.memory_space<vmem>>, vector<1x8x256xf32>
      %38 = vector.shape_cast %37 : vector<1x8x256xf32> to vector<8x256xf32>
      %39 = arith.addf %38, %30 : vector<8x256xf32>
      %c0_22 = arith.constant 0 : index
      %c0_23 = arith.constant 0 : index
      %c0_24 = arith.constant 0 : index
      %40 = vector.load %arg7[%c0_22, %c0_23, %c0_24] : memref<1x8x256xf32, #tpu.memory_space<vmem>>, vector<1x8x256xf32>
      %41 = vector.shape_cast %40 : vector<1x8x256xf32> to vector<8x256xf32>
      %42 = vector.shape_cast %39 : vector<8x256xf32> to vector<1x8x256xf32>
      tpu.vector_store %arg7[%c0_22, %c0_23, %c0_24], %42 {strides = array<i32>} : memref<1x8x256xf32, #tpu.memory_space<vmem>>, vector<1x8x256xf32>,
    } else {
    }
    return
  }
  func.func @transform_0(%arg0: i32, %arg1: i32) -> (i32, i32) {
    %c0_i32 = arith.constant 0 : i32
    %c0_i32_0 = arith.constant 0 : i32
    %c0_i32_1 = arith.constant 0 : i32
    return %c0_i32, %c0_i32_0 : i32, i32
  }
  func.func @transform_1(%arg0: i32, %arg1: i32) -> (i32, i32) {
    %c4_i32 = arith.constant 4 : i32
    %0 = arith.muli %arg0, %c4_i32 : i32
    %1 = arith.addi %0, %arg1 : i32
    %c0_i32 = arith.constant 0 : i32
    %c0_i32_0 = arith.constant 0 : i32
    return %c0_i32, %1 : i32, i32
  }
  func.func @transform_2(%arg0: i32, %arg1: i32) -> (i32, i32) {
    %c4_i32 = arith.constant 4 : i32
    %0 = arith.muli %arg0, %c4_i32 : i32
    %1 = arith.addi %0, %arg1 : i32
    %c0_i32 = arith.constant 0 : i32
    %c0_i32_0 = arith.constant 0 : i32
    return %c0_i32, %1 : i32, i32
  }
  func.func @transform_3(%arg0: i32, %arg1: i32) -> (i32, i32) {
    %c4_i32 = arith.constant 4 : i32
    %0 = arith.muli %arg0, %c4_i32 : i32
    %1 = arith.addi %0, %arg1 : i32
    %c0_i32 = arith.constant 0 : i32
    %c0_i32_0 = arith.constant 0 : i32
    return %c0_i32, %1 : i32, i32
  }
  func.func @transform_4(%arg0: i32, %arg1: i32) -> (i32, i32) {
    %c4_i32 = arith.constant 4 : i32
    %0 = arith.muli %arg0, %c4_i32 : i32
    %1 = arith.addi %0, %arg1 : i32
    %c0_i32 = arith.constant 0 : i32
    %c0_i32_0 = arith.constant 0 : i32
    return %1, %c0_i32 : i32, i32
  }
  func.func @transform_5(%arg0: i32, %arg1: i32) -> (i32, i32, i32) {
    %c0_i32 = arith.constant 0 : i32
    %c0_i32_0 = arith.constant 0 : i32
    %c0_i32_1 = arith.constant 0 : i32
    return %arg0, %c0_i32, %c0_i32_0 : i32, i32, i32
  }
}

module attributes {stable_mosaic.version = 11 : i64} {
  func.func @mlp_head_kernel(%arg0: i32, %arg1: i32, %arg2: memref<8x64xbf16, #tpu.memory_space<vmem>>, %arg3: memref<64x128xbf16, #tpu.memory_space<vmem>>, %arg4: memref<1x128xf32, #tpu.memory_space<vmem>>, %arg5: memref<1x128xf32, #tpu.memory_space<vmem>>, %arg6: memref<128x256xbf16, #tpu.memory_space<vmem>>, %arg7: memref<1x8x256xf32, #tpu.memory_space<vmem>>) attributes {dimension_semantics = [#tpu.dimension_semantics<parallel>, #tpu.dimension_semantics<arbitrary>], iteration_bounds = array<i64: 1, 4>, scalar_prefetch = 0 : i64, scratch_operands = 0 : i64, tpu.core_type = #tpu.core_type<tc>, window_params = [{pipeline_mode = #tpu.pipeline_mode<synchronous>, transform_indices = @transform_0, window_bounds = array<i64: 8, 64>}, {transform_indices = @transform_1, window_bounds = array<i64: 64, 128>}, {transform_indices = @transform_2, window_bounds = array<i64: 1, 128>}, {transform_indices = @transform_3, window_bounds = array<i64: 1, 128>}, {transform_indices = @transform_4, window_bounds = array<i64: 128, 256>}, {transform_indices = @transform_5, window_bounds = array<i64: 1, 8, 256>}]} {
    %c0 = arith.constant 0 : index
    %c0_0 = arith.constant 0 : index
    %0 = vector.load %arg2[%c0, %c0_0] : memref<8x64xbf16, #tpu.memory_space<vmem>>, vector<8x64xbf16>
    %c0_1 = arith.constant 0 : index
    %c0_2 = arith.constant 0 : index
    %1 = vector.load %arg3[%c0_1, %c0_2] : memref<64x128xbf16, #tpu.memory_space<vmem>>, vector<64x128xbf16>
    %cst = arith.constant dense<0.000000e+00> : vector<8x128xf32>
    %2 = tpu.matmul %0, %1, %cst {dimension_numbers = #tpu.dot_dimension_numbers<[1], [0], [0], [1], [0, 0, 1, 1], [], []>} : vector<8x64xbf16>, vector<64x128xbf16>, vector<8x128xf32> -> vector<8x128xf32>
    %cst_3 = arith.constant dense<0.000000e+00> : vector<128xf32>
    %3 = vector.multi_reduction <add>, %2, %cst_3 [0] : vector<8x128xf32> to vector<128xf32>
    %4 = vector.shape_cast %3 : vector<128xf32> to vector<1x128xf32>
    %cst_4 = arith.constant 1.250000e-01 : f32
    %5 = vector.broadcast %cst_4 : f32 to vector<1x128xf32>
    %6 = arith.mulf %4, %5 : vector<1x128xf32>
    %7 = arith.mulf %2, %2 : vector<8x128xf32>
    %cst_5 = arith.constant dense<0.000000e+00> : vector<128xf32>
    %8 = vector.multi_reduction <add>, %7, %cst_5 [0] : vector<8x128xf32> to vector<128xf32>
    %9 = vector.shape_cast %8 : vector<128xf32> to vector<1x128xf32>
    %cst_6 = arith.constant 1.250000e-01 : f32
    %10 = vector.broadcast %cst_6 : f32 to vector<1x128xf32>
    %11 = arith.mulf %9, %10 : vector<1x128xf32>
    %12 = arith.mulf %6, %6 : vector<1x128xf32>
    %13 = arith.subf %11, %12 : vector<1x128xf32>
    %c0_7 = arith.constant 0 : index
    %c0_8 = arith.constant 0 : index
    %14 = vector.load %arg4[%c0_7, %c0_8] : memref<1x128xf32, #tpu.memory_space<vmem>>, vector<1x128xf32>
    %cst_9 = arith.constant 9.99999974E-6 : f32
    %15 = vector.broadcast %cst_9 : f32 to vector<1x128xf32>
    %16 = arith.addf %13, %15 : vector<1x128xf32>
    %17 = math.rsqrt %16 : vector<1x128xf32>
    %18 = arith.mulf %14, %17 : vector<1x128xf32>
    %c0_10 = arith.constant 0 : index
    %c0_11 = arith.constant 0 : index
    %19 = vector.load %arg5[%c0_10, %c0_11] : memref<1x128xf32, #tpu.memory_space<vmem>>, vector<1x128xf32>
    %20 = arith.mulf %6, %18 : vector<1x128xf32>
    %21 = arith.subf %19, %20 : vector<1x128xf32>
    %22 = vector.broadcast %18 : vector<1x128xf32> to vector<8x128xf32>
    %23 = arith.mulf %2, %22 : vector<8x128xf32>
    %24 = vector.broadcast %21 : vector<1x128xf32> to vector<8x128xf32>
    %25 = arith.addf %23, %24 : vector<8x128xf32>
    %cst_12 = arith.constant 0.000000e+00 : f32
    %26 = vector.broadcast %cst_12 : f32 to vector<8x128xf32>
    %27 = arith.maximumf %25, %26 : vector<8x128xf32>
    %28 = arith.truncf %27 : vector<8x128xf32> to vector<8x128xbf16>
    %c0_13 = arith.constant 0 : index
    %c0_14 = arith.constant 0 : index
    %29 = vector.load %arg6[%c0_13, %c0_14] : memref<128x256xbf16, #tpu.memory_space<vmem>>, vector<128x256xbf16>
    %cst_15 = arith.constant dense<0.000000e+00> : vector<8x256xf32>
    %30 = tpu.matmul %28, %29, %cst_15 {dimension_numbers = #tpu.dot_dimension_numbers<[1], [0], [0], [1], [0, 0, 1, 1], [], []>} : vector<8x128xbf16>, vector<128x256xbf16>, vector<8x256xf32> -> vector<8x256xf32>
    %c0_i32 = arith.constant 0 : i32
    %31 = arith.cmpi eq, %arg1, %c0_i32 : i32
    %32 = arith.extui %31 : i1 to i32
    %c0_i32_16 = arith.constant 0 : i32
    %33 = arith.cmpi ne, %32, %c0_i32_16 : i32
    scf.if %33 {
      %c0_19 = arith.constant 0 : index
      %c0_20 = arith.constant 0 : index
      %c0_21 = arith.constant 0 : index
      %37 = vector.load %arg7[%c0_19, %c0_20, %c0_21] : memref<1x8x256xf32, #tpu.memory_space<vmem>>, vector<1x8x256xf32>
      %38 = vector.shape_cast %37 : vector<1x8x256xf32> to vector<8x256xf32>
      %39 = vector.shape_cast %30 : vector<8x256xf32> to vector<1x8x256xf32>
      tpu.vector_store %arg7[%c0_19, %c0_20, %c0_21], %39 {strides = array<i32>} : memref<1x8x256xf32, #tpu.memory_space<vmem>>, vector<1x8x256xf32>,
    } else {
    }
    %c0_i32_17 = arith.constant 0 : i32
    %34 = arith.cmpi sgt, %arg1, %c0_i32_17 : i32
    %35 = arith.extui %34 : i1 to i32
    %c0_i32_18 = arith.constant 0 : i32
    %36 = arith.cmpi ne, %35, %c0_i32_18 : i32
    scf.if %36 {
      %c0_19 = arith.constant 0 : index
      %c0_20 = arith.constant 0 : index
      %c0_21 = arith.constant 0 : index
      %37 = vector.load %arg7[%c0_19, %c0_20, %c0_21] : memref<1x8x256xf32, #tpu.memory_space<vmem>>, vector<1x8x256xf32>
      %38 = vector.shape_cast %37 : vector<1x8x256xf32> to vector<8x256xf32>
      %39 = arith.addf %38, %30 : vector<8x256xf32>
      %c0_22 = arith.constant 0 : index
      %c0_23 = arith.constant 0 : index
      %c0_24 = arith.constant 0 : index
      %40 = vector.load %arg7[%c0_22, %c0_23, %c0_24] : memref<1x8x256xf32, #tpu.memory_space<vmem>>, vector<1x8x256xf32>
      %41 = vector.shape_cast %40 : vector<1x8x256xf32> to vector<8x256xf32>
      %42 = vector.shape_cast %39 : vector<8x256xf32> to vector<1x8x256xf32>
      tpu.vector_store %arg7[%c0_22, %c0_23, %c0_24], %42 {strides = array<i32>} : memref<1x8x256xf32, #tpu.memory_space<vmem>>, vector<1x8x256xf32>,
    } else {
    }
    return
  }
  func.func @transform_0(%arg0: i32, %arg1: i32) -> (i32, i32) {
    %c0_i32 = arith.constant 0 : i32
    %c0_i32_0 = arith.constant 0 : i32
    %c0_i32_1 = arith.constant 0 : i32
    return %c0_i32, %c0_i32_0 : i32, i32
  }
  func.func @transform_1(%arg0: i32, %arg1: i32) -> (i32, i32) {
    %c4_i32 = arith.constant 4 : i32
    %0 = arith.muli %arg0, %c4_i32 : i32
    %1 = arith.addi %0, %arg1 : i32
    %c0_i32 = arith.constant 0 : i32
    %c0_i32_0 = arith.constant 0 : i32
    return %c0_i32, %1 : i32, i32
  }
  func.func @transform_2(%arg0: i32, %arg1: i32) -> (i32, i32) {
    %c4_i32 = arith.constant 4 : i32
    %0 = arith.muli %arg0, %c4_i32 : i32
    %1 = arith.addi %0, %arg1 : i32
    %c0_i32 = arith.constant 0 : i32
    %c0_i32_0 = arith.constant 0 : i32
    return %c0_i32, %1 : i32, i32
  }
  func.func @transform_3(%arg0: i32, %arg1: i32) -> (i32, i32) {
    %c4_i32 = arith.constant 4 : i32
    %0 = arith.muli %arg0, %c4_i32 : i32
    %1 = arith.addi %0, %arg1 : i32
    %c0_i32 = arith.constant 0 : i32
    %c0_i32_0 = arith.constant 0 : i32
    return %c0_i32, %1 : i32, i32
  }
  func.func @transform_4(%arg0: i32, %arg1: i32) -> (i32, i32) {
    %c4_i32 = arith.constant 4 : i32
    %0 = arith.muli %arg0, %c4_i32 : i32
    %1 = arith.addi %0, %arg1 : i32
    %c0_i32 = arith.constant 0 : i32
    %c0_i32_0 = arith.constant 0 : i32
    return %1, %c0_i32 : i32, i32
  }
  func.func @transform_5(%arg0: i32, %arg1: i32) -> (i32, i32, i32) {
    %c0_i32 = arith.constant 0 : i32
    %c0_i32_0 = arith.constant 0 : i32
    %c0_i32_1 = arith.constant 0 : i32
    return %arg0, %c0_i32, %c0_i32_0 : i32, i32, i32
  }
}

</mosaic_0001>

<llo_original>
// kernel: tpu_custom_call.1
$region0: #{tpu_custom_call.1}
  #allocation0 [shape = 'u32[]', space=smem, size = 0x4, offset = 0x4, fixed_abs, tag = 'smem constant byte address 0x4 - core index']
  #allocation1 [shape = 'u32[144,128]{1,0:T(1,128)}', space=vmem, size = 0x12000, scoped, tag = 'internal scratch']
  %s0 = inlined_call_operand.hbm [shape: bf16[8,64], index: 0, kind: input, shape index: {}]
  %s1 = inlined_call_operand.hbm [shape: bf16[64,512], index: 1, kind: input, shape index: {}]
  %s2 = inlined_call_operand.vmem [shape: f32[1,512], index: 2, kind: input, shape index: {}]
  %s3 = inlined_call_operand.vmem [shape: f32[1,512], index: 3, kind: input, shape index: {}]
  %s4 = inlined_call_operand.hbm [shape: bf16[512,256], index: 4, kind: input, shape index: {}]
  %s5 = inlined_call_operand.hbm [shape: f32[1,8,256], index: 5, kind: output, shape index: {}]
  %s6 = sld [smem:[#allocation0]]
  $region73: #{tpu_custom_call.1} parent=0
    _
  %s8 = ssub.s32 1, %s6
  %s9 = scalar_select 0, %s8, %s6
  $region1: #{tpu_custom_call.1} parent=0
    #allocation2 [shape = 'u8[2048]{0}', space=vmem, size = 0x800, scoped, tag = 'input window, operand 0, single buffered']
    #allocation3 [shape = 's32[2]{0}', space=sflag, size = 0x8, scoped, tag = 'scoped memory for tpu_custom_call.1']
    #allocation4 [shape = 's32[2]{0}', space=sflag, size = 0x8, scoped, tag = 'scoped memory for tpu_custom_call.1']
    #allocation5 [shape = 'u8[32768]{0}', space=vmem, size = 0x8000, scoped, tag = 'input window, operand 1']
    #allocation6 [shape = 's32[2]{0}', space=sflag, size = 0x8, scoped, tag = 'scoped memory for tpu_custom_call.1']
    #allocation7 [shape = 'u8[131072]{0}', space=vmem, size = 0x20000, scoped, tag = 'input window, operand 4']
    #allocation8 [shape = 'u8[8192]{0}', space=vmem, size = 0x2000, scoped, tag = 'output window, operand 0, single buffered']
    %10 = vsyncpa [#allocation3], 0
    %11 = vsyncpa [#allocation6], 0
    %s12 = scalar_lea.sflag [#allocation6], 1
    %13 = vsyncpa %s12, 0
    %14 = vsyncpa [#allocation4], 0
    loop: start=0, step=1, limit=6
    $region2: #{tpu_custom_call.1} parent=1 // loop_pre_header
      _
    $region3: #{tpu_custom_call.1} parent=1 // loop_header
      %s16 = sphi 0, %s20
      %p17 = scmp.ge.s32.totalorder %s16, 6
      %s23 = sphi 0, %s35
      %s24 = sphi 0, %s31
      %s25 = sphi 0, %s23
      %s26 = sphi 0, %s24
      %s27 = sphi 0, %s25
      %s28 = sphi 0, %s26
      %s36 = sphi 0, %s36
      %s38 = sphi 0, %s36
      %s39 = sphi 0, %s38
      %s53 = sphi 0, %s39
      %s63 = sphi 0, %s65
      %s66 = sphi 0, %s63
      %s67 = sphi 0, %s66
      %s83 = sphi 0, %s67
      %s93 = sphi 0, %s95
      %s96 = sphi 0, %s93
      %s97 = sphi 0, %s96
      %s113 = sphi 0, %s97
      %s123 = sphi 0, %s125
      %s126 = sphi 0, %s123
      %s127 = sphi 0, %s126
      %s143 = sphi 0, %s127
      %s153 = sphi 0, %s155
      %s156 = sphi 0, %s153
      %s157 = sphi 0, %s156
      %s173 = sphi 0, %s157
      %s179 = sphi 0, %s181
      %s182 = sphi 0, %s179
      %s183 = sphi 0, %s182
      %s199 = sphi 0, %s183
    $region4: #{tpu_custom_call.1} parent=1 // loop_header_branch
      %19 = sbr.rel (%p17) target = $region8
    $region5: #{tpu_custom_call.1} parent=1 // loop_body
      %s21 = ssub.s32 %s16, 1
      %s22 = ssub.s32 %s16, 2
      %s29 = sadd.s32 1, %s24
      %p30 = scmp.ge.s32.totalorder %s29, 4
      %s31 = scalar_select %p30, 0, %s29
      %s32 = sadd.s32 1, %s23
      %s33 = scalar_select %p30, %s32, %s23
      %p34 = scmp.ge.s32.totalorder %s33, 1
      %s35 = scalar_select %p34, 0, %s33
      %s37 = sadd.s32 %s36, 1
      %p40 = scmp.eq.s32.totalorder %s16, 3
      %p41 = scmp.ne.s32.totalorder %s36, %s38
      %p42 = scmp.eq.s32.totalorder %s16, 0
      %p43 = por %p41, %p42
      %p44 = scmp.ne.s32.totalorder %s36, %s38
      %p45 = scmp.eq.s32.totalorder %s21, 3
      %p46 = por %p44, %p45
      %p47 = scmp.ne.s32.totalorder %s38, %s39
      %p48 = scmp.eq.s32.totalorder %s21, 0
      %p49 = por %p47, %p48
      %p50 = scmp.ne.s32.totalorder %s38, %s39
      %p51 = scmp.eq.s32.totalorder %s22, 3
      %p52 = por %p50, %p51
      %p54 = scmp.ne.s32.totalorder %s39, %s53
      %p55 = scmp.eq.s32.totalorder %s22, 0
      %p56 = por %p54, %p55
      %s57 = smul.u32 %s23, 4
      %s58 = sadd.s32 %s57, %s24
      %s59 = smul.u32 %s35, 4
      %s60 = sadd.s32 %s59, %s31
      %s61 = ssub.s32 %s58, %s60
      %p62 = scmp.eq.s32.totalorder %s61, 0
      %s64 = sadd.s32 %s63, 1
      %s65 = scalar_select %p62, %s63, %s64
      %p68 = pneg %p62
      %p69 = scmp.eq.s32.totalorder %s16, 3
      %p70 = por %p68, %p69
      %p71 = scmp.ne.s32.totalorder %s63, %s66
      %p72 = scmp.eq.s32.totalorder %s16, 0
      %p73 = por %p71, %p72
      %p74 = scmp.ne.s32.totalorder %s63, %s66
      %p75 = scmp.eq.s32.totalorder %s21, 3
      %p76 = por %p74, %p75
      %p77 = scmp.ne.s32.totalorder %s66, %s67
      %p78 = scmp.eq.s32.totalorder %s21, 0
      %p79 = por %p77, %p78
      %p80 = scmp.ne.s32.totalorder %s66, %s67
      %p81 = scmp.eq.s32.totalorder %s22, 3
      %p82 = por %p80, %p81
      %p84 = scmp.ne.s32.totalorder %s67, %s83
      %p85 = scmp.eq.s32.totalorder %s22, 0
      %p86 = por %p84, %p85
      %s87 = smul.u32 %s23, 4
      %s88 = sadd.s32 %s87, %s24
      %s89 = smul.u32 %s35, 4
      %s90 = sadd.s32 %s89, %s31
      %s91 = ssub.s32 %s88, %s90
      %p92 = scmp.eq.s32.totalorder %s91, 0
      %s94 = sadd.s32 %s93, 1
      %s95 = scalar_select %p92, %s93, %s94
      %p98 = pneg %p92
      %p99 = scmp.eq.s32.totalorder %s16, 3
      %p100 = por %p98, %p99
      %p101 = scmp.ne.s32.totalorder %s93, %s96
      %p102 = scmp.eq.s32.totalorder %s16, 0
      %p103 = por %p101, %p102
      %p104 = scmp.ne.s32.totalorder %s93, %s96
      %p105 = scmp.eq.s32.totalorder %s21, 3
      %p106 = por %p104, %p105
      %p107 = scmp.ne.s32.totalorder %s96, %s97
      %p108 = scmp.eq.s32.totalorder %s21, 0
      %p109 = por %p107, %p108
      %p110 = scmp.ne.s32.totalorder %s96, %s97
      %p111 = scmp.eq.s32.totalorder %s22, 3
      %p112 = por %p110, %p111
      %p114 = scmp.ne.s32.totalorder %s97, %s113
      %p115 = scmp.eq.s32.totalorder %s22, 0
      %p116 = por %p114, %p115
      %s117 = smul.u32 %s23, 4
      %s118 = sadd.s32 %s117, %s24
      %s119 = smul.u32 %s35, 4
      %s120 = sadd.s32 %s119, %s31
      %s121 = ssub.s32 %s118, %s120
      %p122 = scmp.eq.s32.totalorder %s121, 0
      %s124 = sadd.s32 %s123, 1
      %s125 = scalar_select %p122, %s123, %s124
      %p128 = pneg %p122
      %p129 = scmp.eq.s32.totalorder %s16, 3
      %p130 = por %p128, %p129
      %p131 = scmp.ne.s32.totalorder %s123, %s126
      %p132 = scmp.eq.s32.totalorder %s16, 0
      %p133 = por %p131, %p132
      %p134 = scmp.ne.s32.totalorder %s123, %s126
      %p135 = scmp.eq.s32.totalorder %s21, 3
      %p136 = por %p134, %p135
      %p137 = scmp.ne.s32.totalorder %s126, %s127
      %p138 = scmp.eq.s32.totalorder %s21, 0
      %p139 = por %p137, %p138
      %p140 = scmp.ne.s32.totalorder %s126, %s127
      %p141 = scmp.eq.s32.totalorder %s22, 3
      %p142 = por %p140, %p141
      %p144 = scmp.ne.s32.totalorder %s127, %s143
      %p145 = scmp.eq.s32.totalorder %s22, 0
      %p146 = por %p144, %p145
      %s147 = smul.u32 %s23, 4
      %s148 = sadd.s32 %s147, %s24
      %s149 = smul.u32 %s35, 4
      %s150 = sadd.s32 %s149, %s31
      %s151 = ssub.s32 %s148, %s150
      %p152 = scmp.eq.s32.totalorder %s151, 0
      %s154 = sadd.s32 %s153, 1
      %s155 = scalar_select %p152, %s153, %s154
      %p158 = pneg %p152
      %p159 = scmp.eq.s32.totalorder %s16, 3
      %p160 = por %p158, %p159
      %p161 = scmp.ne.s32.totalorder %s153, %s156
      %p162 = scmp.eq.s32.totalorder %s16, 0
      %p163 = por %p161, %p162
      %p164 = scmp.ne.s32.totalorder %s153, %s156
      %p165 = scmp.eq.s32.totalorder %s21, 3
      %p166 = por %p164, %p165
      %p167 = scmp.ne.s32.totalorder %s156, %s157
      %p168 = scmp.eq.s32.totalorder %s21, 0
      %p169 = por %p167, %p168
      %p170 = scmp.ne.s32.totalorder %s156, %s157
      %p171 = scmp.eq.s32.totalorder %s22, 3
      %p172 = por %p170, %p171
      %p174 = scmp.ne.s32.totalorder %s157, %s173
      %p175 = scmp.eq.s32.totalorder %s22, 0
      %p176 = por %p174, %p175
      %s177 = ssub.s32 %s23, %s35
      %p178 = scmp.eq.s32.totalorder %s177, 0
      %s180 = sadd.s32 %s179, 1
      %s181 = scalar_select %p178, %s179, %s180
      %p184 = pneg %p178
      %p185 = scmp.eq.s32.totalorder %s16, 3
      %p186 = por %p184, %p185
      %p187 = scmp.ne.s32.totalorder %s179, %s182
      %p188 = scmp.eq.s32.totalorder %s16, 0
      %p189 = por %p187, %p188
      %p190 = scmp.ne.s32.totalorder %s179, %s182
      %p191 = scmp.eq.s32.totalorder %s21, 3
      %p192 = por %p190, %p191
      %p193 = scmp.ne.s32.totalorder %s182, %s183
      %p194 = scmp.eq.s32.totalorder %s21, 0
      %p195 = por %p193, %p194
      %p196 = scmp.ne.s32.totalorder %s182, %s183
      %p197 = scmp.eq.s32.totalorder %s22, 3
      %p198 = por %p196, %p197
      %p200 = scmp.ne.s32.totalorder %s183, %s199
      %p201 = scmp.eq.s32.totalorder %s22, 0
      %p202 = por %p200, %p201
      %p203 = scmp.le.s32.totalorder 1, %s16
      %p204 = scmp.lt.s32.totalorder %s16, 5
      %p205 = pnand %p203, %p204
      %p206 = pneg %p205
      // Predicated region
      $region9: #{tpu_custom_call.1} parent=5 // pred_check
        _
      $region10: #{tpu_custom_call.1} parent=5 // pred_check_branch
        %208 = sbr.rel (%p205) target = $region12
      $region11: #{tpu_custom_call.1} parent=5 // pred_region
        %s209 = ssub.s32 %s16, 1
        // Predicated region
        $region13: #{tpu_custom_call.1} parent=11 // pred_check
          %p210 = pneg %p49
        $region14: #{tpu_custom_call.1} parent=11 // pred_check_branch
          %212 = sbr.rel (%p210) target = $region16
        $region15: #{tpu_custom_call.1} parent=11 // pred_region
          %s214 = ssub.s32 64, 64
          %215 = vsyncadd [#allocation3], %s214
          %s217 = sshll.u32 [#allocation2], 4
          %s218 = int_to_ptr.vmem [resolvable:$true] %s217
          %220 = dma.hbm_to_vmem [thread:$0]  %s0, 64, %s218, [#allocation3]
        $region16: #{tpu_custom_call.1} parent=11 // pred_fallthru
          _
      $region12: #{tpu_custom_call.1} parent=5 // pred_fallthru
        _
      %p221 = scmp.lt.s32.totalorder %s16, 4
      // Predicated region
      $region17: #{tpu_custom_call.1} parent=5 // pred_check
        %p222 = pneg %p221
      $region18: #{tpu_custom_call.1} parent=5 // pred_check_branch
        %224 = sbr.rel (%p222) target = $region20
      $region19: #{tpu_custom_call.1} parent=5 // pred_region
        // Predicated region
        $region21: #{tpu_custom_call.1} parent=19 // pred_check
          %p225 = pneg %p73
        $region22: #{tpu_custom_call.1} parent=19 // pred_check_branch
          %227 = sbr.rel (%p225) target = $region24
        $region23: #{tpu_custom_call.1} parent=19 // pred_region
          %s228 = sand.u32 %s16, 1
          %s229 = scalar_lea.sflag [#allocation6], %s228
          %s230 = sand.u32 %s63, 1
          %s231 = smul.addr %s230, 32
          %s232 = scalar_lea.vmem [#allocation5], %s231
          %s233 = smul.u32 %s23, 4
          %s234 = sadd.s32 %s233, %s24
          %s236 = ssub.s32 512, 512
          %237 = vsyncadd %s229, %s236
          %s238 = smul.addr %s234, 64
          %s239 = scalar_lea.hbm %s1, %s238
          %s240 = sshll.u32 %s232, 4
          %s241 = int_to_ptr.vmem [resolvable:$true] %s240
          %246 = dma.hbm_to_vmem [thread:$0]  %s239, 512, %s241, %s229, 256, 64, 4
        $region24: #{tpu_custom_call.1} parent=19 // pred_fallthru
          _
        // Predicated region
        $region25: #{tpu_custom_call.1} parent=19 // pred_check
          %p247 = pneg %p103
        $region26: #{tpu_custom_call.1} parent=19 // pred_check_branch
          %249 = sbr.rel (%p247) target = $region28
        $region27: #{tpu_custom_call.1} parent=19 // pred_region
          %s250 = smul.u32 %s23, 4
          %s251 = sadd.s32 %s250, %s24
          %p252 = scmp.lt.s32.totalorder %s251, 3
          %s253 = scalar_select %p252, %s251, 3
          %s254 = scalar_lea.vmem %s2, %s253
          %s255 = smul.u32 %s23, 4
          %s256 = sadd.s32 %s255, %s24
        $region28: #{tpu_custom_call.1} parent=19 // pred_fallthru
          _
        // Predicated region
        $region29: #{tpu_custom_call.1} parent=19 // pred_check
          %p257 = pneg %p133
        $region30: #{tpu_custom_call.1} parent=19 // pred_check_branch
          %259 = sbr.rel (%p257) target = $region32
        $region31: #{tpu_custom_call.1} parent=19 // pred_region
          %s260 = smul.u32 %s23, 4
          %s261 = sadd.s32 %s260, %s24
          %p262 = scmp.lt.s32.totalorder %s261, 3
          %s263 = scalar_select %p262, %s261, 3
          %s264 = scalar_lea.vmem %s3, %s263
          %s265 = smul.u32 %s23, 4
          %s266 = sadd.s32 %s265, %s24
        $region32: #{tpu_custom_call.1} parent=19 // pred_fallthru
          _
        // Predicated region
        $region33: #{tpu_custom_call.1} parent=19 // pred_check
          %p267 = pneg %p163
        $region34: #{tpu_custom_call.1} parent=19 // pred_check_branch
          %269 = sbr.rel (%p267) target = $region36
        $region35: #{tpu_custom_call.1} parent=19 // pred_region
          %s270 = sand.u32 %s16, 1
          %s271 = scalar_lea.sflag [#allocation6], %s270
          %s272 = sand.u32 %s153, 1
          %s273 = smul.addr %s272, 128
          %s274 = scalar_lea.vmem [#allocation7], %s273
          %s275 = smul.u32 %s23, 4
          %s276 = sadd.s32 %s275, %s24
          %s277 = smul.u32 16, %s276
          %s279 = ssub.s32 2048, 2048
          %280 = vsyncadd %s271, %s279
          %s281 = smul.addr %s277, 2
          %s282 = smul.addr %s281, 64
          %s283 = scalar_lea.hbm %s4, %s282
          %s284 = sshll.u32 %s274, 4
          %s285 = int_to_ptr.vmem [resolvable:$true] %s284
          %290 = dma.hbm_to_vmem [thread:$0]  %s283, 2048, %s285, %s271, 128, 128, 8
        $region36: #{tpu_custom_call.1} parent=19 // pred_fallthru
          _
      $region20: #{tpu_custom_call.1} parent=5 // pred_fallthru
        _
      %p291 = scmp.le.s32.totalorder 1, %s16
      %p292 = scmp.lt.s32.totalorder %s16, 5
      %p293 = pnand %p291, %p292
      %p294 = pneg %p293
      // Predicated region
      $region37: #{tpu_custom_call.1} parent=5 // pred_check
        _
      $region38: #{tpu_custom_call.1} parent=5 // pred_check_branch
        %296 = sbr.rel (%p293) target = $region40
      $region39: #{tpu_custom_call.1} parent=5 // pred_region
        %s297 = ssub.s32 %s16, 1
        // Predicated region
        $region41: #{tpu_custom_call.1} parent=39 // pred_check
          %p298 = pneg %p49
        $region42: #{tpu_custom_call.1} parent=39 // pred_check_branch
          %300 = sbr.rel (%p298) target = $region44
        $region43: #{tpu_custom_call.1} parent=39 // pred_region
          %301 = dma.done [#allocation3], 64
        $region44: #{tpu_custom_call.1} parent=39 // pred_fallthru
          _
        %s302 = sand.u32 %s21, 1
        %s303 = scalar_lea.sflag [#allocation6], %s302
        %s304 = sand.u32 %s66, 1
        %s305 = smul.addr %s304, 32
        %s306 = scalar_lea.vmem [#allocation5], %s305
        // Predicated region
        $region45: #{tpu_custom_call.1} parent=39 // pred_check
          %p307 = pneg %p79
        $region46: #{tpu_custom_call.1} parent=39 // pred_check_branch
          %309 = sbr.rel (%p307) target = $region48
        $region47: #{tpu_custom_call.1} parent=39 // pred_region
          %310 = dma.done %s303, 512
        $region48: #{tpu_custom_call.1} parent=39 // pred_fallthru
          _
        %s311 = sand.u32 %s21, 1
        %s312 = scalar_lea.sflag [#allocation6], %s311
        %s313 = sand.u32 %s156, 1
        %s314 = smul.addr %s313, 128
        %s315 = scalar_lea.vmem [#allocation7], %s314
        // Predicated region
        $region49: #{tpu_custom_call.1} parent=39 // pred_check
          %p316 = pneg %p169
        $region50: #{tpu_custom_call.1} parent=39 // pred_check_branch
          %318 = sbr.rel (%p316) target = $region52
        $region51: #{tpu_custom_call.1} parent=39 // pred_region
          %319 = dma.done %s312, 2048
        $region52: #{tpu_custom_call.1} parent=39 // pred_fallthru
          _
        %p320 = pneg %p49
        %p321 = pneg %p46
        %s322 = sand.u32 %s21, 1
        %s323 = scalar_lea.sflag [#allocation6], %s322
        %s324 = sand.u32 %s66, 1
        %s325 = smul.addr %s324, 32
        %s326 = scalar_lea.vmem [#allocation5], %s325
        %p327 = pneg %p79
        %p328 = pneg %p76
        %s329 = smul.u32 %s25, 4
        %s330 = sadd.s32 %s329, %s26
        %p331 = scmp.lt.s32.totalorder %s330, 3
        %s332 = scalar_select %p331, %s330, 3
        %s333 = scalar_lea.vmem %s2, %s332
        %p334 = pneg %p109
        %p335 = pneg %p106
        %s336 = smul.u32 %s25, 4
        %s337 = sadd.s32 %s336, %s26
        %p338 = scmp.lt.s32.totalorder %s337, 3
        %s339 = scalar_select %p338, %s337, 3
        %s340 = scalar_lea.vmem %s3, %s339
        %p341 = pneg %p139
        %p342 = pneg %p136
        %s343 = sand.u32 %s21, 1
        %s344 = scalar_lea.sflag [#allocation6], %s343
        %s345 = sand.u32 %s156, 1
        %s346 = smul.addr %s345, 128
        %s347 = scalar_lea.vmem [#allocation7], %s346
        %p348 = pneg %p169
        %p349 = pneg %p166
        %p350 = pneg %p195
        %p351 = pneg %p192
        %s352 = smul.u32 %s25, 4
        %s353 = sadd.s32 %s352, %s26
        %s354 = smul.u32 %s25, 4
        %s355 = sadd.s32 %s354, %s26
        %p356 = scmp.lt.s32.totalorder %s355, 3
        %s357 = scalar_select %p356, %s355, 3
        %s358 = scalar_lea.vmem %s2, %s357
        %s359 = smul.u32 %s25, 4
        %s360 = sadd.s32 %s359, %s26
        %s361 = smul.u32 %s25, 4
        %s362 = sadd.s32 %s361, %s26
        %p363 = scmp.lt.s32.totalorder %s362, 3
        %s364 = scalar_select %p363, %s362, 3
        %s365 = scalar_lea.vmem %s3, %s364
        %s366 = smul.u32 %s25, 4
        %s367 = sadd.s32 %s366, %s26
        %s368 = smul.u32 %s25, 4
        %s369 = sadd.s32 %s368, %s26
        %s370 = smul.u32 16, %s369
        %v372 = vld [vmem:[#allocation2] sm:$0xf]
        %v373 = vld [vmem:[%s306] sm:$0xf]
        %v374 = vld [vmem:[%s306 + $0x4] sm:$0xf]
        %v375 = vld [vmem:[%s306 + $0x8] sm:$0xf]
        %v376 = vld [vmem:[%s306 + $0xc] sm:$0xf]
        %v377 = vld [vmem:[%s306 + $0x10] sm:$0xf]
        %v378 = vld [vmem:[%s306 + $0x14] sm:$0xf]
        %v379 = vld [vmem:[%s306 + $0x18] sm:$0xf]
        %v380 = vld [vmem:[%s306 + $0x1c] sm:$0xf]
        %v389 = vunpack.c.l.b16 %v373
        %v390 = vunpack.c.l.b16 %v374
        %v391 = vunpack.c.l.b16 %v375
        %v392 = vunpack.c.l.b16 %v376
        %v393 = vunpack.c.l.b16 %v377
        %v394 = vunpack.c.l.b16 %v378
        %v395 = vunpack.c.l.b16 %v379
        %v396 = vunpack.c.l.b16 %v380
        %v397 = vpack.c.b16 %v390, %v389
        %v398 = vpack.c.b16 %v392, %v391
        %v399 = vpack.c.b16 %v394, %v393
        %v400 = vpack.c.b16 %v396, %v395
        %vm405 = vcmask 523264
        %v407 = vsel %vm405, %v372, 0
        %409 = vmatprep.subr.bf16.mxu0 0
        %410 = vmatpush1.bf16.msra.mxu0 %v397
        %411 = vmatprep.subr.bf16.mxu0 0
        %412 = vmatpush1.bf16.msra.mxu0 %v398
        %413 = vmatprep.subr.bf16.mxu0 0
        %414 = vmatpush1.bf16.msra.mxu0 %v399
        %415 = vmatprep.subr.bf16.mxu0 0
        %416 = vmatpush1.bf16.msra.mxu0 %v400
        %417 = vmatprep.subr.bf16.mxu0 0
        %418 = vmatpush1.bf16.msra.mxu0 0
        %419 = vmatprep.subr.bf16.mxu0 0
        %420 = vmatpush1.bf16.msra.mxu0 0
        %421 = vmatprep.subr.bf16.mxu0 0
        %422 = vmatpush1.bf16.msra.mxu0 0
        %423 = vmatprep.subr.bf16.mxu0 0
        %424 = vmatpush1.bf16.msra.mxu0 0
        %425 = vmatprep.subr.bf16.mxu0 0
        %426 = vmatpush1.bf16.msra.mxu0 0
        %427 = vmatprep.subr.bf16.mxu0 0
        %428 = vmatpush1.bf16.msra.mxu0 0
        %429 = vmatprep.subr.bf16.mxu0 0
        %430 = vmatpush1.bf16.msra.mxu0 0
        %431 = vmatprep.subr.bf16.mxu0 0
        %432 = vmatpush1.bf16.msra.mxu0 0
        %433 = vmatprep.subr.bf16.mxu0 0
        %434 = vmatpush1.bf16.msra.mxu0 0
        %435 = vmatprep.subr.bf16.mxu0 0
        %436 = vmatpush1.bf16.msra.mxu0 0
        %437 = vmatprep.subr.bf16.mxu0 0
        %438 = vmatpush1.bf16.msra.mxu0 0
        %439 = vmatprep.subr.bf16.mxu0 0
        %440 = vmatpush1.bf16.msra.mxu0 0
        %441 = vmatprep.mubr.bf16.mxu0 0
        %442 = vmatmul.mubr.bf16.gmra.mrb[0].mxu0 %v407
        %v443 = vpop.f32.mrb[0].mxu0
        %v444 = vadd.f32 0.0, %v443
        %v445 = vpop.f32.mrb[0].mxu0
        %v446 = vpop.f32.mrb[0].mxu0
        %v447 = vpop.f32.mrb[0].mxu0
        %448 = vdwg.mxu0
        %v449 = vrot.slane %v444, 4
        %v450 = vadd.f32 %v444, %v449
        %v451 = vrot.slane %v450, 2
        %v452 = vadd.f32 %v450, %v451
        %v453 = vrot.slane %v452, 1
        %v454 = vadd.f32 %v452, %v453
        %v455 = vmul.f32 %v454, 0.125
        %v456 = vmul.f32 %v444, %v444
        %v457 = vrot.slane %v456, 4
        %v458 = vadd.f32 %v456, %v457
        %v459 = vrot.slane %v458, 2
        %v460 = vadd.f32 %v458, %v459
        %v461 = vrot.slane %v460, 1
        %v462 = vadd.f32 %v460, %v461
        %v463 = vmul.f32 %v462, 0.125
        %v464 = vmul.f32 %v455, %v455
        %v465 = vsub.f32 %v463, %v464
        %v466 = vld [vmem:[%s358] sm:$0x1]
        %v467 = vadd.f32 %v465, 1e-05
        %v468 = vrsqrt.pop %v467
        %v469 = vmul.f32 %v466, %v468
        %v470 = vld [vmem:[%s365] sm:$0x1]
        %v471 = vmul.f32 %v455, %v469
        %v472 = vsub.f32 %v470, %v471
        %v474 = vlaneseq
        %v475 = vshrl.u32 %v474, 7
        %v476 = vsub.s32 0, %v475
        %v477 = vrot.slane %v469, %v476
        %v479 = vmul.f32 %v444, %v477
        %v481 = vlaneseq
        %v482 = vshrl.u32 %v481, 7
        %v483 = vsub.s32 0, %v482
        %v484 = vrot.slane %v472, %v483
        %v486 = vadd.f32 %v479, %v484
        %v487 = vmax.f32 %v486, 0.0
        %v488 = vpack.c.bf16 %v487, %v487
        %v489 = vld [vmem:[%s315] sm:$0xff]
        %v490 = vld [vmem:[%s315 + $0x8] sm:$0xff]
        %v491 = vld [vmem:[%s315 + $0x10] sm:$0xff]
        %v492 = vld [vmem:[%s315 + $0x18] sm:$0xff]
        %v493 = vld [vmem:[%s315 + $0x20] sm:$0xff]
        %v494 = vld [vmem:[%s315 + $0x28] sm:$0xff]
        %v495 = vld [vmem:[%s315 + $0x30] sm:$0xff]
        %v496 = vld [vmem:[%s315 + $0x38] sm:$0xff]
        %v497 = vld [vmem:[%s315 + $0x40] sm:$0xff]
        %v498 = vld [vmem:[%s315 + $0x48] sm:$0xff]
        %v499 = vld [vmem:[%s315 + $0x50] sm:$0xff]
        %v500 = vld [vmem:[%s315 + $0x58] sm:$0xff]
        %v501 = vld [vmem:[%s315 + $0x60] sm:$0xff]
        %v502 = vld [vmem:[%s315 + $0x68] sm:$0xff]
        %v503 = vld [vmem:[%s315 + $0x70] sm:$0xff]
        %v504 = vld [vmem:[%s315 + $0x78] sm:$0xff]
        %v521 = vunpack.c.l.b16 %v489
        %v522 = vunpack.c.h.b16 %v489
        %v523 = vunpack.c.l.b16 %v490
        %v524 = vunpack.c.h.b16 %v490
        %v525 = vunpack.c.l.b16 %v491
        %v526 = vunpack.c.h.b16 %v491
        %v527 = vunpack.c.l.b16 %v492
        %v528 = vunpack.c.h.b16 %v492
        %v529 = vunpack.c.l.b16 %v493
        %v530 = vunpack.c.h.b16 %v493
        %v531 = vunpack.c.l.b16 %v494
        %v532 = vunpack.c.h.b16 %v494
        %v533 = vunpack.c.l.b16 %v495
        %v534 = vunpack.c.h.b16 %v495
        %v535 = vunpack.c.l.b16 %v496
        %v536 = vunpack.c.h.b16 %v496
        %v537 = vunpack.c.l.b16 %v497
        %v538 = vunpack.c.h.b16 %v497
        %v539 = vunpack.c.l.b16 %v498
        %v540 = vunpack.c.h.b16 %v498
        %v541 = vunpack.c.l.b16 %v499
        %v542 = vunpack.c.h.b16 %v499
        %v543 = vunpack.c.l.b16 %v500
        %v544 = vunpack.c.h.b16 %v500
        %v545 = vunpack.c.l.b16 %v501
        %v546 = vunpack.c.h.b16 %v501
        %v547 = vunpack.c.l.b16 %v502
        %v548 = vunpack.c.h.b16 %v502
        %v549 = vunpack.c.l.b16 %v503
        %v550 = vunpack.c.h.b16 %v503
        %v551 = vunpack.c.l.b16 %v504
        %v552 = vunpack.c.h.b16 %v504
        %v553 = vpack.c.b16 %v523, %v521
        %v554 = vpack.c.b16 %v524, %v522
        %v555 = vpack.c.b16 %v527, %v525
        %v556 = vpack.c.b16 %v528, %v526
        %v557 = vpack.c.b16 %v531, %v529
        %v558 = vpack.c.b16 %v532, %v530
        %v559 = vpack.c.b16 %v535, %v533
        %v560 = vpack.c.b16 %v536, %v534
        %v561 = vpack.c.b16 %v539, %v537
        %v562 = vpack.c.b16 %v540, %v538
        %v563 = vpack.c.b16 %v543, %v541
        %v564 = vpack.c.b16 %v544, %v542
        %v565 = vpack.c.b16 %v547, %v545
        %v566 = vpack.c.b16 %v548, %v546
        %v567 = vpack.c.b16 %v551, %v549
        %v568 = vpack.c.b16 %v552, %v550
        %585 = vmatprep.subr.bf16.mxu0 %v554
        %586 = vmatpush1.bf16.msra.mxu0 %v553
        %587 = vmatprep.subr.bf16.mxu0 %v556
        %588 = vmatpush1.bf16.msra.mxu0 %v555
        %589 = vmatprep.subr.bf16.mxu0 %v558
        %590 = vmatpush1.bf16.msra.mxu0 %v557
        %591 = vmatprep.subr.bf16.mxu0 %v560
        %592 = vmatpush1.bf16.msra.mxu0 %v559
        %593 = vmatprep.subr.bf16.mxu0 %v562
        %594 = vmatpush1.bf16.msra.mxu0 %v561
        %595 = vmatprep.subr.bf16.mxu0 %v564
        %596 = vmatpush1.bf16.msra.mxu0 %v563
        %597 = vmatprep.subr.bf16.mxu0 %v566
        %598 = vmatpush1.bf16.msra.mxu0 %v565
        %599 = vmatprep.subr.bf16.mxu0 %v568
        %600 = vmatpush1.bf16.msra.mxu0 %v567
        %601 = vmatprep.subr.bf16.mxu0 0
        %602 = vmatpush1.bf16.msra.mxu0 0
        %603 = vmatprep.subr.bf16.mxu0 0
        %604 = vmatpush1.bf16.msra.mxu0 0
        %605 = vmatprep.subr.bf16.mxu0 0
        %606 = vmatpush1.bf16.msra.mxu0 0
        %607 = vmatprep.subr.bf16.mxu0 0
        %608 = vmatpush1.bf16.msra.mxu0 0
        %609 = vmatprep.subr.bf16.mxu0 0
        %610 = vmatpush1.bf16.msra.mxu0 0
        %611 = vmatprep.subr.bf16.mxu0 0
        %612 = vmatpush1.bf16.msra.mxu0 0
        %613 = vmatprep.subr.bf16.mxu0 0
        %614 = vmatpush1.bf16.msra.mxu0 0
        %615 = vmatprep.subr.bf16.mxu0 0
        %616 = vmatpush1.bf16.msra.mxu0 0
        %617 = vmatprep.mubr.bf16.mxu0 0
        %618 = vmatmul.mubr.bf16.gmra.mrb[0].mxu0 %v488
        %v619 = vpop.f32.mrb[0].mxu0
        %v620 = vadd.f32 0.0, %v619
        %v621 = vpop.f32.mrb[0].mxu0
        %v622 = vadd.f32 0.0, %v621
        %v623 = vpop.f32.mrb[0].mxu0
        %v624 = vpop.f32.mrb[0].mxu0
        %625 = vdwg.mxu0
        %p626 = scmp.eq.s32.totalorder %s26, 0
        // Predicated region
        $region53: #{tpu_custom_call.1} parent=39 // pred_check
          %p627 = pneg %p626
        $region54: #{tpu_custom_call.1} parent=39 // pred_check_branch
          %629 = sbr.rel (%p627) target = $region56
        $region55: #{tpu_custom_call.1} parent=39 // pred_region
          %630 = vst [vmem:[#allocation8] sm:$0xff] %v620
          %631 = vst [vmem:[#allocation8 + $0x8] sm:$0xff] %v622
        $region56: #{tpu_custom_call.1} parent=39 // pred_fallthru
          _
        %p632 = scmp.gt.s32.totalorder %s26, 0
        // Predicated region
        $region57: #{tpu_custom_call.1} parent=39 // pred_check
          %p633 = pneg %p632
        $region58: #{tpu_custom_call.1} parent=39 // pred_check_branch
          %635 = sbr.rel (%p633) target = $region60
        $region59: #{tpu_custom_call.1} parent=39 // pred_region
          %v636 = vld [vmem:[#allocation8] sm:$0xff]
          %v637 = vld [vmem:[#allocation8 + $0x8] sm:$0xff]
          %v638 = vadd.f32 %v636, %v620
          %v639 = vadd.f32 %v637, %v622
          %640 = vst [vmem:[#allocation8] sm:$0xff] %v638
          %641 = vst [vmem:[#allocation8 + $0x8] sm:$0xff] %v639
        $region60: #{tpu_custom_call.1} parent=39 // pred_fallthru
          _
        // Predicated region
        $region61: #{tpu_custom_call.1} parent=39 // pred_check
          %p642 = pneg %p192
        $region62: #{tpu_custom_call.1} parent=39 // pred_check_branch
          %644 = sbr.rel (%p642) target = $region64
        $region63: #{tpu_custom_call.1} parent=39 // pred_region
          %s646 = ssub.s32 256, 256
          %647 = vsyncadd [#allocation4], %s646
          %s648 = smul.addr %s25, 2
          %s649 = smul.addr %s648, 128
          %s650 = scalar_lea.hbm %s5, %s649
          %s652 = sshll.u32 [#allocation8], 4
          %s653 = int_to_ptr.vmem [resolvable:$true] %s652
          %655 = dma.vmem_to_hbm [thread:$0]  %s653, 256, %s650, [#allocation4]
        $region64: #{tpu_custom_call.1} parent=39 // pred_fallthru
          _
        // Predicated region
        $region65: #{tpu_custom_call.1} parent=39 // pred_check
          %p656 = pneg %p192
        $region66: #{tpu_custom_call.1} parent=39 // pred_check_branch
          %658 = sbr.rel (%p656) target = $region68
        $region67: #{tpu_custom_call.1} parent=39 // pred_region
          %659 = dma.done [#allocation4], 256
        $region68: #{tpu_custom_call.1} parent=39 // pred_fallthru
          _
      $region40: #{tpu_custom_call.1} parent=5 // pred_fallthru
        _
      %p660 = scmp.le.s32.totalorder 2, %s16
      // Predicated region
      $region69: #{tpu_custom_call.1} parent=5 // pred_check
        %p661 = pneg %p660
      $region70: #{tpu_custom_call.1} parent=5 // pred_check_branch
        %663 = sbr.rel (%p661) target = $region72
      $region71: #{tpu_custom_call.1} parent=5 // pred_region
        %s664 = ssub.s32 %s16, 2
      $region72: #{tpu_custom_call.1} parent=5 // pred_fallthru
        _
    $region6: #{tpu_custom_call.1} parent=1 // loop_footer
      %s20 = sadd.s32 1, %s16
    $region7: #{tpu_custom_call.1} parent=1 // loop_footer_branch
      %15 = sbr.rel target = $region3
    $region8: #{tpu_custom_call.1} parent=1 // loop_exit
      _
    %665 = vsyncpa [#allocation3], 1
    %s666 = scalar_lea.sflag [#allocation3], 1
    %667 = vsyncpa %s666, 1
    %668 = vsyncpa [#allocation6], 1
    %s669 = scalar_lea.sflag [#allocation6], 1
    %670 = vsyncpa %s669, 1
    %671 = vsyncpa [#allocation4], 1
    %s672 = scalar_lea.sflag [#allocation4], 1
    %673 = vsyncpa %s672, 1

// kernel: tpu_custom_call.1
$region0: #{tpu_custom_call.1}
  #allocation0 [shape = 'u32[]', space=smem, size = 0x4, offset = 0x4, fixed_abs, tag = 'smem constant byte address 0x4 - core index']
  #allocation1 [shape = 'u32[144,128]{1,0:T(1,128)}', space=vmem, size = 0x12000, scoped, tag = 'internal scratch']
  %s0 = inlined_call_operand.hbm [shape: bf16[8,64], index: 0, kind: input, shape index: {}]
  %s1 = inlined_call_operand.hbm [shape: bf16[64,512], index: 1, kind: input, shape index: {}]
  %s2 = inlined_call_operand.vmem [shape: f32[1,512], index: 2, kind: input, shape index: {}]
  %s3 = inlined_call_operand.vmem [shape: f32[1,512], index: 3, kind: input, shape index: {}]
  %s4 = inlined_call_operand.hbm [shape: bf16[512,256], index: 4, kind: input, shape index: {}]
  %s5 = inlined_call_operand.hbm [shape: f32[1,8,256], index: 5, kind: output, shape index: {}]
  %s6 = sld [smem:[#allocation0]]
  $region73: #{tpu_custom_call.1} parent=0
    _
  %s8 = ssub.s32 1, %s6
  %s9 = scalar_select 0, %s8, %s6
  $region1: #{tpu_custom_call.1} parent=0
    #allocation2 [shape = 'u8[2048]{0}', space=vmem, size = 0x800, scoped, tag = 'input window, operand 0, single buffered']
    #allocation3 [shape = 's32[2]{0}', space=sflag, size = 0x8, scoped, tag = 'scoped memory for tpu_custom_call.1']
    #allocation4 [shape = 's32[2]{0}', space=sflag, size = 0x8, scoped, tag = 'scoped memory for tpu_custom_call.1']
    #allocation5 [shape = 'u8[32768]{0}', space=vmem, size = 0x8000, scoped, tag = 'input window, operand 1']
    #allocation6 [shape = 's32[2]{0}', space=sflag, size = 0x8, scoped, tag = 'scoped memory for tpu_custom_call.1']
    #allocation7 [shape = 'u8[131072]{0}', space=vmem, size = 0x20000, scoped, tag = 'input window, operand 4']
    #allocation8 [shape = 'u8[8192]{0}', space=vmem, size = 0x2000, scoped, tag = 'output window, operand 0, single buffered']
    %10 = vsyncpa [#allocation3], 0
    %11 = vsyncpa [#allocation6], 0
    %s12 = scalar_lea.sflag [#allocation6], 1
    %13 = vsyncpa %s12, 0
    %14 = vsyncpa [#allocation4], 0
    loop: start=0, step=1, limit=6
    $region2: #{tpu_custom_call.1} parent=1 // loop_pre_header
      _
    $region3: #{tpu_custom_call.1} parent=1 // loop_header
      %s16 = sphi 0, %s20
      %p17 = scmp.ge.s32.totalorder %s16, 6
      %s23 = sphi 0, %s35
      %s24 = sphi 0, %s31
      %s25 = sphi 0, %s23
      %s26 = sphi 0, %s24
      %s27 = sphi 0, %s25
      %s28 = sphi 0, %s26
      %s36 = sphi 0, %s36
      %s38 = sphi 0, %s36
      %s39 = sphi 0, %s38
      %s53 = sphi 0, %s39
      %s63 = sphi 0, %s65
      %s66 = sphi 0, %s63
      %s67 = sphi 0, %s66
      %s83 = sphi 0, %s67
      %s93 = sphi 0, %s95
      %s96 = sphi 0, %s93
      %s97 = sphi 0, %s96
      %s113 = sphi 0, %s97
      %s123 = sphi 0, %s125
      %s126 = sphi 0, %s123
      %s127 = sphi 0, %s126
      %s143 = sphi 0, %s127
      %s153 = sphi 0, %s155
      %s156 = sphi 0, %s153
      %s157 = sphi 0, %s156
      %s173 = sphi 0, %s157
      %s179 = sphi 0, %s181
      %s182 = sphi 0, %s179
      %s183 = sphi 0, %s182
      %s199 = sphi 0, %s183
    $region4: #{tpu_custom_call.1} parent=1 // loop_header_branch
      %19 = sbr.rel (%p17) target = $region8
    $region5: #{tpu_custom_call.1} parent=1 // loop_body
      %s21 = ssub.s32 %s16, 1
      %s22 = ssub.s32 %s16, 2
      %s29 = sadd.s32 1, %s24
      %p30 = scmp.ge.s32.totalorder %s29, 4
      %s31 = scalar_select %p30, 0, %s29
      %s32 = sadd.s32 1, %s23
      %s33 = scalar_select %p30, %s32, %s23
      %p34 = scmp.ge.s32.totalorder %s33, 1
      %s35 = scalar_select %p34, 0, %s33
      %s37 = sadd.s32 %s36, 1
      %p40 = scmp.eq.s32.totalorder %s16, 3
      %p41 = scmp.ne.s32.totalorder %s36, %s38
      %p42 = scmp.eq.s32.totalorder %s16, 0
      %p43 = por %p41, %p42
      %p44 = scmp.ne.s32.totalorder %s36, %s38
      %p45 = scmp.eq.s32.totalorder %s21, 3
      %p46 = por %p44, %p45
      %p47 = scmp.ne.s32.totalorder %s38, %s39
      %p48 = scmp.eq.s32.totalorder %s21, 0
      %p49 = por %p47, %p48
      %p50 = scmp.ne.s32.totalorder %s38, %s39
      %p51 = scmp.eq.s32.totalorder %s22, 3
      %p52 = por %p50, %p51
      %p54 = scmp.ne.s32.totalorder %s39, %s53
      %p55 = scmp.eq.s32.totalorder %s22, 0
      %p56 = por %p54, %p55
      %s57 = smul.u32 %s23, 4
      %s58 = sadd.s32 %s57, %s24
      %s59 = smul.u32 %s35, 4
      %s60 = sadd.s32 %s59, %s31
      %s61 = ssub.s32 %s58, %s60
      %p62 = scmp.eq.s32.totalorder %s61, 0
      %s64 = sadd.s32 %s63, 1
      %s65 = scalar_select %p62, %s63, %s64
      %p68 = pneg %p62
      %p69 = scmp.eq.s32.totalorder %s16, 3
      %p70 = por %p68, %p69
      %p71 = scmp.ne.s32.totalorder %s63, %s66
      %p72 = scmp.eq.s32.totalorder %s16, 0
      %p73 = por %p71, %p72
      %p74 = scmp.ne.s32.totalorder %s63, %s66
      %p75 = scmp.eq.s32.totalorder %s21, 3
      %p76 = por %p74, %p75
      %p77 = scmp.ne.s32.totalorder %s66, %s67
      %p78 = scmp.eq.s32.totalorder %s21, 0
      %p79 = por %p77, %p78
      %p80 = scmp.ne.s32.totalorder %s66, %s67
      %p81 = scmp.eq.s32.totalorder %s22, 3
      %p82 = por %p80, %p81
      %p84 = scmp.ne.s32.totalorder %s67, %s83
      %p85 = scmp.eq.s32.totalorder %s22, 0
      %p86 = por %p84, %p85
      %s87 = smul.u32 %s23, 4
      %s88 = sadd.s32 %s87, %s24
      %s89 = smul.u32 %s35, 4
      %s90 = sadd.s32 %s89, %s31
      %s91 = ssub.s32 %s88, %s90
      %p92 = scmp.eq.s32.totalorder %s91, 0
      %s94 = sadd.s32 %s93, 1
      %s95 = scalar_select %p92, %s93, %s94
      %p98 = pneg %p92
      %p99 = scmp.eq.s32.totalorder %s16, 3
      %p100 = por %p98, %p99
      %p101 = scmp.ne.s32.totalorder %s93, %s96
      %p102 = scmp.eq.s32.totalorder %s16, 0
      %p103 = por %p101, %p102
      %p104 = scmp.ne.s32.totalorder %s93, %s96
      %p105 = scmp.eq.s32.totalorder %s21, 3
      %p106 = por %p104, %p105
      %p107 = scmp.ne.s32.totalorder %s96, %s97
      %p108 = scmp.eq.s32.totalorder %s21, 0
      %p109 = por %p107, %p108
      %p110 = scmp.ne.s32.totalorder %s96, %s97
      %p111 = scmp.eq.s32.totalorder %s22, 3
      %p112 = por %p110, %p111
      %p114 = scmp.ne.s32.totalorder %s97, %s113
      %p115 = scmp.eq.s32.totalorder %s22, 0
      %p116 = por %p114, %p115
      %s117 = smul.u32 %s23, 4
      %s118 = sadd.s32 %s117, %s24
      %s119 = smul.u32 %s35, 4
      %s120 = sadd.s32 %s119, %s31
      %s121 = ssub.s32 %s118, %s120
      %p122 = scmp.eq.s32.totalorder %s121, 0
      %s124 = sadd.s32 %s123, 1
      %s125 = scalar_select %p122, %s123, %s124
      %p128 = pneg %p122
      %p129 = scmp.eq.s32.totalorder %s16, 3
      %p130 = por %p128, %p129
      %p131 = scmp.ne.s32.totalorder %s123, %s126
      %p132 = scmp.eq.s32.totalorder %s16, 0
      %p133 = por %p131, %p132
      %p134 = scmp.ne.s32.totalorder %s123, %s126
      %p135 = scmp.eq.s32.totalorder %s21, 3
      %p136 = por %p134, %p135
      %p137 = scmp.ne.s32.totalorder %s126, %s127
      %p138 = scmp.eq.s32.totalorder %s21, 0
      %p139 = por %p137, %p138
      %p140 = scmp.ne.s32.totalorder %s126, %s127
      %p141 = scmp.eq.s32.totalorder %s22, 3
      %p142 = por %p140, %p141
      %p144 = scmp.ne.s32.totalorder %s127, %s143
      %p145 = scmp.eq.s32.totalorder %s22, 0
      %p146 = por %p144, %p145
      %s147 = smul.u32 %s23, 4
      %s148 = sadd.s32 %s147, %s24
      %s149 = smul.u32 %s35, 4
      %s150 = sadd.s32 %s149, %s31
      %s151 = ssub.s32 %s148, %s150
      %p152 = scmp.eq.s32.totalorder %s151, 0
      %s154 = sadd.s32 %s153, 1
      %s155 = scalar_select %p152, %s153, %s154
      %p158 = pneg %p152
      %p159 = scmp.eq.s32.totalorder %s16, 3
      %p160 = por %p158, %p159
      %p161 = scmp.ne.s32.totalorder %s153, %s156
      %p162 = scmp.eq.s32.totalorder %s16, 0
      %p163 = por %p161, %p162
      %p164 = scmp.ne.s32.totalorder %s153, %s156
      %p165 = scmp.eq.s32.totalorder %s21, 3
      %p166 = por %p164, %p165
      %p167 = scmp.ne.s32.totalorder %s156, %s157
      %p168 = scmp.eq.s32.totalorder %s21, 0
      %p169 = por %p167, %p168
      %p170 = scmp.ne.s32.totalorder %s156, %s157
      %p171 = scmp.eq.s32.totalorder %s22, 3
      %p172 = por %p170, %p171
      %p174 = scmp.ne.s32.totalorder %s157, %s173
      %p175 = scmp.eq.s32.totalorder %s22, 0
      %p176 = por %p174, %p175
      %s177 = ssub.s32 %s23, %s35
      %p178 = scmp.eq.s32.totalorder %s177, 0
      %s180 = sadd.s32 %s179, 1
      %s181 = scalar_select %p178, %s179, %s180
      %p184 = pneg %p178
      %p185 = scmp.eq.s32.totalorder %s16, 3
      %p186 = por %p184, %p185
      %p187 = scmp.ne.s32.totalorder %s179, %s182
      %p188 = scmp.eq.s32.totalorder %s16, 0
      %p189 = por %p187, %p188
      %p190 = scmp.ne.s32.totalorder %s179, %s182
      %p191 = scmp.eq.s32.totalorder %s21, 3
      %p192 = por %p190, %p191
      %p193 = scmp.ne.s32.totalorder %s182, %s183
      %p194 = scmp.eq.s32.totalorder %s21, 0
      %p195 = por %p193, %p194
      %p196 = scmp.ne.s32.totalorder %s182, %s183
      %p197 = scmp.eq.s32.totalorder %s22, 3
      %p198 = por %p196, %p197
      %p200 = scmp.ne.s32.totalorder %s183, %s199
      %p201 = scmp.eq.s32.totalorder %s22, 0
      %p202 = por %p200, %p201
      %p203 = scmp.le.s32.totalorder 1, %s16
      %p204 = scmp.lt.s32.totalorder %s16, 5
      %p205 = pnand %p203, %p204
      %p206 = pneg %p205
      // Predicated region
      $region9: #{tpu_custom_call.1} parent=5 // pred_check
        _
      $region10: #{tpu_custom_call.1} parent=5 // pred_check_branch
        %208 = sbr.rel (%p205) target = $region12
      $region11: #{tpu_custom_call.1} parent=5 // pred_region
        %s209 = ssub.s32 %s16, 1
        // Predicated region
        $region13: #{tpu_custom_call.1} parent=11 // pred_check
          %p210 = pneg %p49
        $region14: #{tpu_custom_call.1} parent=11 // pred_check_branch
          %212 = sbr.rel (%p210) target = $region16
        $region15: #{tpu_custom_call.1} parent=11 // pred_region
          %s214 = ssub.s32 64, 64
          %215 = vsyncadd [#allocation3], %s214
          %s217 = sshll.u32 [#allocation2], 4
          %s218 = int_to_ptr.vmem [resolvable:$true] %s217
          %220 = dma.hbm_to_vmem [thread:$0]  %s0, 64, %s218, [#allocation3]
        $region16: #{tpu_custom_call.1} parent=11 // pred_fallthru
          _
      $region12: #{tpu_custom_call.1} parent=5 // pred_fallthru
        _
      %p221 = scmp.lt.s32.totalorder %s16, 4
      // Predicated region
      $region17: #{tpu_custom_call.1} parent=5 // pred_check
        %p222 = pneg %p221
      $region18: #{tpu_custom_call.1} parent=5 // pred_check_branch
        %224 = sbr.rel (%p222) target = $region20
      $region19: #{tpu_custom_call.1} parent=5 // pred_region
        // Predicated region
        $region21: #{tpu_custom_call.1} parent=19 // pred_check
          %p225 = pneg %p73
        $region22: #{tpu_custom_call.1} parent=19 // pred_check_branch
          %227 = sbr.rel (%p225) target = $region24
        $region23: #{tpu_custom_call.1} parent=19 // pred_region
          %s228 = sand.u32 %s16, 1
          %s229 = scalar_lea.sflag [#allocation6], %s228
          %s230 = sand.u32 %s63, 1
          %s231 = smul.addr %s230, 32
          %s232 = scalar_lea.vmem [#allocation5], %s231
          %s233 = smul.u32 %s23, 4
          %s234 = sadd.s32 %s233, %s24
          %s236 = ssub.s32 512, 512
          %237 = vsyncadd %s229, %s236
          %s238 = smul.addr %s234, 64
          %s239 = scalar_lea.hbm %s1, %s238
          %s240 = sshll.u32 %s232, 4
          %s241 = int_to_ptr.vmem [resolvable:$true] %s240
          %246 = dma.hbm_to_vmem [thread:$0]  %s239, 512, %s241, %s229, 256, 64, 4
        $region24: #{tpu_custom_call.1} parent=19 // pred_fallthru
          _
        // Predicated region
        $region25: #{tpu_custom_call.1} parent=19 // pred_check
          %p247 = pneg %p103
        $region26: #{tpu_custom_call.1} parent=19 // pred_check_branch
          %249 = sbr.rel (%p247) target = $region28
        $region27: #{tpu_custom_call.1} parent=19 // pred_region
          %s250 = smul.u32 %s23, 4
          %s251 = sadd.s32 %s250, %s24
          %p252 = scmp.lt.s32.totalorder %s251, 3
          %s253 = scalar_select %p252, %s251, 3
          %s254 = scalar_lea.vmem %s2, %s253
          %s255 = smul.u32 %s23, 4
          %s256 = sadd.s32 %s255, %s24
        $region28: #{tpu_custom_call.1} parent=19 // pred_fallthru
          _
        // Predicated region
        $region29: #{tpu_custom_call.1} parent=19 // pred_check
          %p257 = pneg %p133
        $region30: #{tpu_custom_call.1} parent=19 // pred_check_branch
          %259 = sbr.rel (%p257) target = $region32
        $region31: #{tpu_custom_call.1} parent=19 // pred_region
          %s260 = smul.u32 %s23, 4
          %s261 = sadd.s32 %s260, %s24
          %p262 = scmp.lt.s32.totalorder %s261, 3
          %s263 = scalar_select %p262, %s261, 3
          %s264 = scalar_lea.vmem %s3, %s263
          %s265 = smul.u32 %s23, 4
          %s266 = sadd.s32 %s265, %s24
        $region32: #{tpu_custom_call.1} parent=19 // pred_fallthru
          _
        // Predicated region
        $region33: #{tpu_custom_call.1} parent=19 // pred_check
          %p267 = pneg %p163
        $region34: #{tpu_custom_call.1} parent=19 // pred_check_branch
          %269 = sbr.rel (%p267) target = $region36
        $region35: #{tpu_custom_call.1} parent=19 // pred_region
          %s270 = sand.u32 %s16, 1
          %s271 = scalar_lea.sflag [#allocation6], %s270
          %s272 = sand.u32 %s153, 1
          %s273 = smul.addr %s272, 128
          %s274 = scalar_lea.vmem [#allocation7], %s273
          %s275 = smul.u32 %s23, 4
          %s276 = sadd.s32 %s275, %s24
          %s277 = smul.u32 16, %s276
          %s279 = ssub.s32 2048, 2048
          %280 = vsyncadd %s271, %s279
          %s281 = smul.addr %s277, 2
          %s282 = smul.addr %s281, 64
          %s283 = scalar_lea.hbm %s4, %s282
          %s284 = sshll.u32 %s274, 4
          %s285 = int_to_ptr.vmem [resolvable:$true] %s284
          %290 = dma.hbm_to_vmem [thread:$0]  %s283, 2048, %s285, %s271, 128, 128, 8
        $region36: #{tpu_custom_call.1} parent=19 // pred_fallthru
          _
      $region20: #{tpu_custom_call.1} parent=5 // pred_fallthru
        _
      %p291 = scmp.le.s32.totalorder 1, %s16
      %p292 = scmp.lt.s32.totalorder %s16, 5
      %p293 = pnand %p291, %p292
      %p294 = pneg %p293
      // Predicated region
      $region37: #{tpu_custom_call.1} parent=5 // pred_check
        _
      $region38: #{tpu_custom_call.1} parent=5 // pred_check_branch
        %296 = sbr.rel (%p293) target = $region40
      $region39: #{tpu_custom_call.1} parent=5 // pred_region
        %s297 = ssub.s32 %s16, 1
        // Predicated region
        $region41: #{tpu_custom_call.1} parent=39 // pred_check
          %p298 = pneg %p49
        $region42: #{tpu_custom_call.1} parent=39 // pred_check_branch
          %300 = sbr.rel (%p298) target = $region44
        $region43: #{tpu_custom_call.1} parent=39 // pred_region
          %301 = dma.done [#allocation3], 64
        $region44: #{tpu_custom_call.1} parent=39 // pred_fallthru
          _
        %s302 = sand.u32 %s21, 1
        %s303 = scalar_lea.sflag [#allocation6], %s302
        %s304 = sand.u32 %s66, 1
        %s305 = smul.addr %s304, 32
        %s306 = scalar_lea.vmem [#allocation5], %s305
        // Predicated region
        $region45: #{tpu_custom_call.1} parent=39 // pred_check
          %p307 = pneg %p79
        $region46: #{tpu_custom_call.1} parent=39 // pred_check_branch
          %309 = sbr.rel (%p307) target = $region48
        $region47: #{tpu_custom_call.1} parent=39 // pred_region
          %310 = dma.done %s303, 512
        $region48: #{tpu_custom_call.1} parent=39 // pred_fallthru
          _
        %s311 = sand.u32 %s21, 1
        %s312 = scalar_lea.sflag [#allocation6], %s311
        %s313 = sand.u32 %s156, 1
        %s314 = smul.addr %s313, 128
        %s315 = scalar_lea.vmem [#allocation7], %s314
        // Predicated region
        $region49: #{tpu_custom_call.1} parent=39 // pred_check
          %p316 = pneg %p169
        $region50: #{tpu_custom_call.1} parent=39 // pred_check_branch
          %318 = sbr.rel (%p316) target = $region52
        $region51: #{tpu_custom_call.1} parent=39 // pred_region
          %319 = dma.done %s312, 2048
        $region52: #{tpu_custom_call.1} parent=39 // pred_fallthru
          _
        %p320 = pneg %p49
        %p321 = pneg %p46
        %s322 = sand.u32 %s21, 1
        %s323 = scalar_lea.sflag [#allocation6], %s322
        %s324 = sand.u32 %s66, 1
        %s325 = smul.addr %s324, 32
        %s326 = scalar_lea.vmem [#allocation5], %s325
        %p327 = pneg %p79
        %p328 = pneg %p76
        %s329 = smul.u32 %s25, 4
        %s330 = sadd.s32 %s329, %s26
        %p331 = scmp.lt.s32.totalorder %s330, 3
        %s332 = scalar_select %p331, %s330, 3
        %s333 = scalar_lea.vmem %s2, %s332
        %p334 = pneg %p109
        %p335 = pneg %p106
        %s336 = smul.u32 %s25, 4
        %s337 = sadd.s32 %s336, %s26
        %p338 = scmp.lt.s32.totalorder %s337, 3
        %s339 = scalar_select %p338, %s337, 3
        %s340 = scalar_lea.vmem %s3, %s339
        %p341 = pneg %p139
        %p342 = pneg %p136
        %s343 = sand.u32 %s21, 1
        %s344 = scalar_lea.sflag [#allocation6], %s343
        %s345 = sand.u32 %s156, 1
        %s346 = smul.addr %s345, 128
        %s347 = scalar_lea.vmem [#allocation7], %s346
        %p348 = pneg %p169
        %p349 = pneg %p166
        %p350 = pneg %p195
        %p351 = pneg %p192
        %s352 = smul.u32 %s25, 4
        %s353 = sadd.s32 %s352, %s26
        %s354 = smul.u32 %s25, 4
        %s355 = sadd.s32 %s354, %s26
        %p356 = scmp.lt.s32.totalorder %s355, 3
        %s357 = scalar_select %p356, %s355, 3
        %s358 = scalar_lea.vmem %s2, %s357
        %s359 = smul.u32 %s25, 4
        %s360 = sadd.s32 %s359, %s26
        %s361 = smul.u32 %s25, 4
        %s362 = sadd.s32 %s361, %s26
        %p363 = scmp.lt.s32.totalorder %s362, 3
        %s364 = scalar_select %p363, %s362, 3
        %s365 = scalar_lea.vmem %s3, %s364
        %s366 = smul.u32 %s25, 4
        %s367 = sadd.s32 %s366, %s26
        %s368 = smul.u32 %s25, 4
        %s369 = sadd.s32 %s368, %s26
        %s370 = smul.u32 16, %s369
        %v372 = vld [vmem:[#allocation2] sm:$0xf]
        %v373 = vld [vmem:[%s306] sm:$0xf]
        %v374 = vld [vmem:[%s306 + $0x4] sm:$0xf]
        %v375 = vld [vmem:[%s306 + $0x8] sm:$0xf]
        %v376 = vld [vmem:[%s306 + $0xc] sm:$0xf]
        %v377 = vld [vmem:[%s306 + $0x10] sm:$0xf]
        %v378 = vld [vmem:[%s306 + $0x14] sm:$0xf]
        %v379 = vld [vmem:[%s306 + $0x18] sm:$0xf]
        %v380 = vld [vmem:[%s306 + $0x1c] sm:$0xf]
        %v389 = vunpack.c.l.b16 %v373
        %v390 = vunpack.c.l.b16 %v374
        %v391 = vunpack.c.l.b16 %v375
        %v392 = vunpack.c.l.b16 %v376
        %v393 = vunpack.c.l.b16 %v377
        %v394 = vunpack.c.l.b16 %v378
        %v395 = vunpack.c.l.b16 %v379
        %v396 = vunpack.c.l.b16 %v380
        %v397 = vpack.c.b16 %v390, %v389
        %v398 = vpack.c.b16 %v392, %v391
        %v399 = vpack.c.b16 %v394, %v393
        %v400 = vpack.c.b16 %v396, %v395
        %vm405 = vcmask 523264
        %v407 = vsel %vm405, %v372, 0
        %409 = vmatprep.subr.bf16.mxu0 0
        %410 = vmatpush1.bf16.msra.mxu0 %v397
        %411 = vmatprep.subr.bf16.mxu0 0
        %412 = vmatpush1.bf16.msra.mxu0 %v398
        %413 = vmatprep.subr.bf16.mxu0 0
        %414 = vmatpush1.bf16.msra.mxu0 %v399
        %415 = vmatprep.subr.bf16.mxu0 0
        %416 = vmatpush1.bf16.msra.mxu0 %v400
        %417 = vmatprep.subr.bf16.mxu0 0
        %418 = vmatpush1.bf16.msra.mxu0 0
        %419 = vmatprep.subr.bf16.mxu0 0
        %420 = vmatpush1.bf16.msra.mxu0 0
        %421 = vmatprep.subr.bf16.mxu0 0
        %422 = vmatpush1.bf16.msra.mxu0 0
        %423 = vmatprep.subr.bf16.mxu0 0
        %424 = vmatpush1.bf16.msra.mxu0 0
        %425 = vmatprep.subr.bf16.mxu0 0
        %426 = vmatpush1.bf16.msra.mxu0 0
        %427 = vmatprep.subr.bf16.mxu0 0
        %428 = vmatpush1.bf16.msra.mxu0 0
        %429 = vmatprep.subr.bf16.mxu0 0
        %430 = vmatpush1.bf16.msra.mxu0 0
        %431 = vmatprep.subr.bf16.mxu0 0
        %432 = vmatpush1.bf16.msra.mxu0 0
        %433 = vmatprep.subr.bf16.mxu0 0
        %434 = vmatpush1.bf16.msra.mxu0 0
        %435 = vmatprep.subr.bf16.mxu0 0
        %436 = vmatpush1.bf16.msra.mxu0 0
        %437 = vmatprep.subr.bf16.mxu0 0
        %438 = vmatpush1.bf16.msra.mxu0 0
        %439 = vmatprep.subr.bf16.mxu0 0
        %440 = vmatpush1.bf16.msra.mxu0 0
        %441 = vmatprep.mubr.bf16.mxu0 0
        %442 = vmatmul.mubr.bf16.gmra.mrb[0].mxu0 %v407
        %v443 = vpop.f32.mrb[0].mxu0
        %v444 = vadd.f32 0.0, %v443
        %v445 = vpop.f32.mrb[0].mxu0
        %v446 = vpop.f32.mrb[0].mxu0
        %v447 = vpop.f32.mrb[0].mxu0
        %448 = vdwg.mxu0
        %v449 = vrot.slane %v444, 4
        %v450 = vadd.f32 %v444, %v449
        %v451 = vrot.slane %v450, 2
        %v452 = vadd.f32 %v450, %v451
        %v453 = vrot.slane %v452, 1
        %v454 = vadd.f32 %v452, %v453
        %v455 = vmul.f32 %v454, 0.125
        %v456 = vmul.f32 %v444, %v444
        %v457 = vrot.slane %v456, 4
        %v458 = vadd.f32 %v456, %v457
        %v459 = vrot.slane %v458, 2
        %v460 = vadd.f32 %v458, %v459
        %v461 = vrot.slane %v460, 1
        %v462 = vadd.f32 %v460, %v461
        %v463 = vmul.f32 %v462, 0.125
        %v464 = vmul.f32 %v455, %v455
        %v465 = vsub.f32 %v463, %v464
        %v466 = vld [vmem:[%s358] sm:$0x1]
        %v467 = vadd.f32 %v465, 1e-05
        %v468 = vrsqrt.pop %v467
        %v469 = vmul.f32 %v466, %v468
        %v470 = vld [vmem:[%s365] sm:$0x1]
        %v471 = vmul.f32 %v455, %v469
        %v472 = vsub.f32 %v470, %v471
        %v474 = vlaneseq
        %v475 = vshrl.u32 %v474, 7
        %v476 = vsub.s32 0, %v475
        %v477 = vrot.slane %v469, %v476
        %v479 = vmul.f32 %v444, %v477
        %v481 = vlaneseq
        %v482 = vshrl.u32 %v481, 7
        %v483 = vsub.s32 0, %v482
        %v484 = vrot.slane %v472, %v483
        %v486 = vadd.f32 %v479, %v484
        %v487 = vmax.f32 %v486, 0.0
        %v488 = vpack.c.bf16 %v487, %v487
        %v489 = vld [vmem:[%s315] sm:$0xff]
        %v490 = vld [vmem:[%s315 + $0x8] sm:$0xff]
        %v491 = vld [vmem:[%s315 + $0x10] sm:$0xff]
        %v492 = vld [vmem:[%s315 + $0x18] sm:$0xff]
        %v493 = vld [vmem:[%s315 + $0x20] sm:$0xff]
        %v494 = vld [vmem:[%s315 + $0x28] sm:$0xff]
        %v495 = vld [vmem:[%s315 + $0x30] sm:$0xff]
        %v496 = vld [vmem:[%s315 + $0x38] sm:$0xff]
        %v497 = vld [vmem:[%s315 + $0x40] sm:$0xff]
        %v498 = vld [vmem:[%s315 + $0x48] sm:$0xff]
        %v499 = vld [vmem:[%s315 + $0x50] sm:$0xff]
        %v500 = vld [vmem:[%s315 + $0x58] sm:$0xff]
        %v501 = vld [vmem:[%s315 + $0x60] sm:$0xff]
        %v502 = vld [vmem:[%s315 + $0x68] sm:$0xff]
        %v503 = vld [vmem:[%s315 + $0x70] sm:$0xff]
        %v504 = vld [vmem:[%s315 + $0x78] sm:$0xff]
        %v521 = vunpack.c.l.b16 %v489
        %v522 = vunpack.c.h.b16 %v489
        %v523 = vunpack.c.l.b16 %v490
        %v524 = vunpack.c.h.b16 %v490
        %v525 = vunpack.c.l.b16 %v491
        %v526 = vunpack.c.h.b16 %v491
        %v527 = vunpack.c.l.b16 %v492
        %v528 = vunpack.c.h.b16 %v492
        %v529 = vunpack.c.l.b16 %v493
        %v530 = vunpack.c.h.b16 %v493
        %v531 = vunpack.c.l.b16 %v494
        %v532 = vunpack.c.h.b16 %v494
        %v533 = vunpack.c.l.b16 %v495
        %v534 = vunpack.c.h.b16 %v495
        %v535 = vunpack.c.l.b16 %v496
        %v536 = vunpack.c.h.b16 %v496
        %v537 = vunpack.c.l.b16 %v497
        %v538 = vunpack.c.h.b16 %v497
        %v539 = vunpack.c.l.b16 %v498
        %v540 = vunpack.c.h.b16 %v498
        %v541 = vunpack.c.l.b16 %v499
        %v542 = vunpack.c.h.b16 %v499
        %v543 = vunpack.c.l.b16 %v500
        %v544 = vunpack.c.h.b16 %v500
        %v545 = vunpack.c.l.b16 %v501
        %v546 = vunpack.c.h.b16 %v501
        %v547 = vunpack.c.l.b16 %v502
        %v548 = vunpack.c.h.b16 %v502
        %v549 = vunpack.c.l.b16 %v503
        %v550 = vunpack.c.h.b16 %v503
        %v551 = vunpack.c.l.b16 %v504
        %v552 = vunpack.c.h.b16 %v504
        %v553 = vpack.c.b16 %v523, %v521
        %v554 = vpack.c.b16 %v524, %v522
        %v555 = vpack.c.b16 %v527, %v525
        %v556 = vpack.c.b16 %v528, %v526
        %v557 = vpack.c.b16 %v531, %v529
        %v558 = vpack.c.b16 %v532, %v530
        %v559 = vpack.c.b16 %v535, %v533
        %v560 = vpack.c.b16 %v536, %v534
        %v561 = vpack.c.b16 %v539, %v537
        %v562 = vpack.c.b16 %v540, %v538
        %v563 = vpack.c.b16 %v543, %v541
        %v564 = vpack.c.b16 %v544, %v542
        %v565 = vpack.c.b16 %v547, %v545
        %v566 = vpack.c.b16 %v548, %v546
        %v567 = vpack.c.b16 %v551, %v549
        %v568 = vpack.c.b16 %v552, %v550
        %585 = vmatprep.subr.bf16.mxu0 %v554
        %586 = vmatpush1.bf16.msra.mxu0 %v553
        %587 = vmatprep.subr.bf16.mxu0 %v556
        %588 = vmatpush1.bf16.msra.mxu0 %v555
        %589 = vmatprep.subr.bf16.mxu0 %v558
        %590 = vmatpush1.bf16.msra.mxu0 %v557
        %591 = vmatprep.subr.bf16.mxu0 %v560
        %592 = vmatpush1.bf16.msra.mxu0 %v559
        %593 = vmatprep.subr.bf16.mxu0 %v562
        %594 = vmatpush1.bf16.msra.mxu0 %v561
        %595 = vmatprep.subr.bf16.mxu0 %v564
        %596 = vmatpush1.bf16.msra.mxu0 %v563
        %597 = vmatprep.subr.bf16.mxu0 %v566
        %598 = vmatpush1.bf16.msra.mxu0 %v565
        %599 = vmatprep.subr.bf16.mxu0 %v568
        %600 = vmatpush1.bf16.msra.mxu0 %v567
        %601 = vmatprep.subr.bf16.mxu0 0
        %602 = vmatpush1.bf16.msra.mxu0 0
        %603 = vmatprep.subr.bf16.mxu0 0
        %604 = vmatpush1.bf16.msra.mxu0 0
        %605 = vmatprep.subr.bf16.mxu0 0
        %606 = vmatpush1.bf16.msra.mxu0 0
        %607 = vmatprep.subr.bf16.mxu0 0
        %608 = vmatpush1.bf16.msra.mxu0 0
        %609 = vmatprep.subr.bf16.mxu0 0
        %610 = vmatpush1.bf16.msra.mxu0 0
        %611 = vmatprep.subr.bf16.mxu0 0
        %612 = vmatpush1.bf16.msra.mxu0 0
        %613 = vmatprep.subr.bf16.mxu0 0
        %614 = vmatpush1.bf16.msra.mxu0 0
        %615 = vmatprep.subr.bf16.mxu0 0
        %616 = vmatpush1.bf16.msra.mxu0 0
        %617 = vmatprep.mubr.bf16.mxu0 0
        %618 = vmatmul.mubr.bf16.gmra.mrb[0].mxu0 %v488
        %v619 = vpop.f32.mrb[0].mxu0
        %v620 = vadd.f32 0.0, %v619
        %v621 = vpop.f32.mrb[0].mxu0
        %v622 = vadd.f32 0.0, %v621
        %v623 = vpop.f32.mrb[0].mxu0
        %v624 = vpop.f32.mrb[0].mxu0
        %625 = vdwg.mxu0
        %p626 = scmp.eq.s32.totalorder %s26, 0
        // Predicated region
        $region53: #{tpu_custom_call.1} parent=39 // pred_check
          %p627 = pneg %p626
        $region54: #{tpu_custom_call.1} parent=39 // pred_check_branch
          %629 = sbr.rel (%p627) target = $region56
        $region55: #{tpu_custom_call.1} parent=39 // pred_region
          %630 = vst [vmem:[#allocation8] sm:$0xff] %v620
          %631 = vst [vmem:[#allocation8 + $0x8] sm:$0xff] %v622
        $region56: #{tpu_custom_call.1} parent=39 // pred_fallthru
          _
        %p632 = scmp.gt.s32.totalorder %s26, 0
        // Predicated region
        $region57: #{tpu_custom_call.1} parent=39 // pred_check
          %p633 = pneg %p632
        $region58: #{tpu_custom_call.1} parent=39 // pred_check_branch
          %635 = sbr.rel (%p633) target = $region60
        $region59: #{tpu_custom_call.1} parent=39 // pred_region
          %v636 = vld [vmem:[#allocation8] sm:$0xff]
          %v637 = vld [vmem:[#allocation8 + $0x8] sm:$0xff]
          %v638 = vadd.f32 %v636, %v620
          %v639 = vadd.f32 %v637, %v622
          %640 = vst [vmem:[#allocation8] sm:$0xff] %v638
          %641 = vst [vmem:[#allocation8 + $0x8] sm:$0xff] %v639
        $region60: #{tpu_custom_call.1} parent=39 // pred_fallthru
          _
        // Predicated region
        $region61: #{tpu_custom_call.1} parent=39 // pred_check
          %p642 = pneg %p192
        $region62: #{tpu_custom_call.1} parent=39 // pred_check_branch
          %644 = sbr.rel (%p642) target = $region64
        $region63: #{tpu_custom_call.1} parent=39 // pred_region
          %s646 = ssub.s32 256, 256
          %647 = vsyncadd [#allocation4], %s646
          %s648 = smul.addr %s25, 2
          %s649 = smul.addr %s648, 128
          %s650 = scalar_lea.hbm %s5, %s649
          %s652 = sshll.u32 [#allocation8], 4
          %s653 = int_to_ptr.vmem [resolvable:$true] %s652
          %655 = dma.vmem_to_hbm [thread:$0]  %s653, 256, %s650, [#allocation4]
        $region64: #{tpu_custom_call.1} parent=39 // pred_fallthru
          _
        // Predicated region
        $region65: #{tpu_custom_call.1} parent=39 // pred_check
          %p656 = pneg %p192
        $region66: #{tpu_custom_call.1} parent=39 // pred_check_branch
          %658 = sbr.rel (%p656) target = $region68
        $region67: #{tpu_custom_call.1} parent=39 // pred_region
          %659 = dma.done [#allocation4], 256
        $region68: #{tpu_custom_call.1} parent=39 // pred_fallthru
          _
      $region40: #{tpu_custom_call.1} parent=5 // pred_fallthru
        _
      %p660 = scmp.le.s32.totalorder 2, %s16
      // Predicated region
      $region69: #{tpu_custom_call.1} parent=5 // pred_check
        %p661 = pneg %p660
      $region70: #{tpu_custom_call.1} parent=5 // pred_check_branch
        %663 = sbr.rel (%p661) target = $region72
      $region71: #{tpu_custom_call.1} parent=5 // pred_region
        %s664 = ssub.s32 %s16, 2
      $region72: #{tpu_custom_call.1} parent=5 // pred_fallthru
        _
    $region6: #{tpu_custom_call.1} parent=1 // loop_footer
      %s20 = sadd.s32 1, %s16
    $region7: #{tpu_custom_call.1} parent=1 // loop_footer_branch
      %15 = sbr.rel target = $region3
    $region8: #{tpu_custom_call.1} parent=1 // loop_exit
      _
    %665 = vsyncpa [#allocation3], 1
    %s666 = scalar_lea.sflag [#allocation3], 1
    %667 = vsyncpa %s666, 1
    %668 = vsyncpa [#allocation6], 1
    %s669 = scalar_lea.sflag [#allocation6], 1
    %670 = vsyncpa %s669, 1
    %671 = vsyncpa [#allocation4], 1
    %s672 = scalar_lea.sflag [#allocation4], 1
    %673 = vsyncpa %s672, 1

</llo_original>
